<compile_context>
chip_gen: v5e
topology: v5e:2x2
jax: 0.10.0
libtpu: 0.0.40
codegen_flags: <defaults>
</compile_context>

<pallas_src>
import jax
import jax.numpy as jnp
from jax import lax
from jax.experimental import pallas as pl
from jax.experimental.pallas import tpu as pltpu


def _round_up(n, mult):
    return ((n + mult - 1) // mult) * mult


# ----------------------------------------------------------------------------
# Fused kernel factory: per grid step, T_chunk timesteps of all L LSTM layers,
# running max-over-time, and (on the last chunk) the final Linear.
# ----------------------------------------------------------------------------
def make_nlp_kernel(L, T, T_pad, TC, B_tile, M, K, unroll):
    """Ref order:
      inputs : pre0 (TC, B_tile, 4M) bf16   -- x @ W_ih[0], streamed per chunk
               w_hh[l] (M, 4M) bf16, l = 0..L-1
               w_ih[l] (M, 4M) bf16, l = 1..L-1
               b[l]    (1, 4M) f32,  l = 0..L-1
               fc_w (M, K) f32, fc_b (1, K) f32
      output : out (B_tile, K) f32
      scratch: h_state (L, B_tile, M) f32, c_state (L, B_tile, M) f32,
               hmax (B_tile, M) f32,
               [L > 1] hbuf (TC*B_tile, M) bf16, prebuf (TC*B_tile, 4M) f32
    """

    def kernel(*refs):
        it = iter(refs)
        pre0_ref = next(it)
        whh_refs = [next(it) for _ in range(L)]
        wih_refs = [next(it) for _ in range(L - 1)]
        b_refs = [next(it) for _ in range(L)]
        fcw_ref = next(it)
        fcb_ref = next(it)
        out_ref = next(it)
        h_state = next(it)
        c_state = next(it)
        hmax_ref = next(it)
        hbuf = next(it) if L > 1 else None
        prebuf = next(it) if L > 1 else None

        c_idx = pl.program_id(1)
        n_chunks = pl.num_programs(1)
        t_base = c_idx * TC

        @pl.when(c_idx == 0)
        def _init():
            h_state[...] = jnp.zeros_like(h_state)
            c_state[...] = jnp.zeros_like(c_state)
            hmax_ref[...] = jnp.full((B_tile, M), -jnp.inf, jnp.float32)

        def lstm_cell(lyr, pre, h, c):
            # W_hh read from VMEM inside the dot (not hoisted across the loop)
            # so big weights don't force vreg spills; vld slots have slack.
            g = pre + jnp.dot(h.astype(jnp.bfloat16), whh_refs[lyr][...],
                              preferred_element_type=jnp.float32)
            # NOTE: for production sizes keep M a multiple of 128 so these
            # per-gate slices stay lane-aligned (no XLU re-layout on the
            # serial critical path).
            i_g = jax.nn.sigmoid(g[:, 0 * M:1 * M])
            f_g = jax.nn.sigmoid(g[:, 1 * M:2 * M])
            g_g = jnp.tanh(g[:, 2 * M:3 * M])
            o_g = jax.nn.sigmoid(g[:, 3 * M:4 * M])
            c_new = f_g * c + i_g * g_g
            h_new = o_g * jnp.tanh(c_new)
            return h_new, c_new

        for l in range(L):
            last = (l == L - 1)
            h0 = h_state[l]
            c0 = c_state[l]

            if l == 0:
                # Hoist the bias broadcast out of the loop (JAX won't CSE it).
                bias0 = jnp.broadcast_to(b_refs[0][...], (B_tile, 4 * M))

                def read_pre(j):
                    return pre0_ref[j].astype(jnp.float32) + bias0
            else:
                def read_pre(j):
                    r = pl.multiple_of(j * B_tile, B_tile)
                    return prebuf[pl.ds(r, B_tile), :]

            if last:
                # Fuse running max-over-time into the recurrence; mask padded
                # timesteps only when T was padded up to a chunk multiple.
                def step(j, carry, lyr=l, rp=read_pre):
                    h, c, hm = carry
                    h, c = lstm_cell(lyr, rp(j), h, c)
                    if T_pad > T:
                        hm = jnp.where(t_base + j < T,
                                       jnp.maximum(hm, h), hm)
                    else:
                        hm = jnp.maximum(hm, h)
                    return h, c, hm

                h_f, c_f, hm_f = lax.fori_loop(
                    0, TC, step, (h0, c0, hmax_ref[...]), unroll=unroll)
                hmax_ref[...] = hm_f
            else:
                def step(j, carry, lyr=l, rp=read_pre):
                    h, c = carry
                    h, c = lstm_cell(lyr, rp(j), h, c)
                    r = pl.multiple_of(j * B_tile, B_tile)
                    hbuf[pl.ds(r, B_tile), :] = h.astype(jnp.bfloat16)
                    return h, c

                h_f, c_f = lax.fori_loop(0, TC, step, (h0, c0), unroll=unroll)
                # Next layer's input projection for this chunk: one batched
                # (TC*B, M) x (M, 4M) MXU matmul, bias folded in, f32 acc.
                prebuf[...] = (jnp.dot(hbuf[...], wih_refs[l][...],
                                       preferred_element_type=jnp.float32)
                               + b_refs[l + 1][...])

            h_state[l] = h_f
            c_state[l] = c_f

        # Fused final Linear on the running max; single (B_tile, K) store.
        @pl.when(c_idx == n_chunks - 1)
        def _finalize():
            out_ref[...] = (jnp.dot(hmax_ref[...], fcw_ref[...],
                                    preferred_element_type=jnp.float32)
                            + fcb_ref[...])

    return kernel


# ----------------------------------------------------------------------------
# NLP forward: Embedding -> hoisted layer-0 projection -> fused Pallas kernel
# ----------------------------------------------------------------------------
def nlp_forward(X, params, *, rows_per_chunk=512):
    lstm = params["lstm"]
    L = len(lstm)
    M = lstm[0]["w_hh"].shape[0]
    K = params["fc_w"].shape[1]

    # Embedding lookup (gather) stays in plain-JAX glue feeding the kernel.
    emb = jnp.take(params["embed"], X, axis=0)              # (B, T, D) f32
    B, T, D = emb.shape

    # --- batch tiling -------------------------------------------------------
    B_pad = _round_up(B, 8)                                 # sublane rows
    if B_pad >= 16:
        # At least two batch tiles so v7x's 2nd TensorCore gets work; cap at
        # 256 rows (v6e/v7x MXU height); tiles stay multiples of 8.
        B_tile = min(256, _round_up(-(-B_pad // 2), 8))
    else:
        B_tile = B_pad
    B_pad = _round_up(B_pad, B_tile)
    if B_pad != B:
        emb = jnp.pad(emb, ((0, B_pad - B), (0, 0), (0, 0)))
    n_btiles = B_pad // B_tile

    # --- time chunking ------------------------------------------------------
    # ~rows_per_chunk rows per inter-layer matmul keeps the MXU busy while
    # capping VMEM independently of T.
    TC = max(1, min(T, rows_per_chunk // B_tile))
    T_pad = _round_up(T, TC)
    NC = T_pad // TC
    unroll = max(1, min(8, TC))          # bounded unroll (no full-T unroll)

    # --- hoisted layer-0 input projection (one big MXU matmul, no serial dep)
    x_tbd = jnp.transpose(emb, (1, 0, 2))                   # (T, B_pad, D)
    l0 = lstm[0]
    pre0 = jnp.dot(x_tbd.reshape(T * B_pad, D).astype(jnp.bfloat16),
                   l0["w_ih"], preferred_element_type=jnp.float32)
    pre0 = pre0.reshape(T, B_pad, 4 * M).astype(jnp.bfloat16)   # ship as bf16
    if T_pad != T:
        pre0 = jnp.pad(pre0, ((0, T_pad - T), (0, 0), (0, 0)))

    args = [pre0]
    args += [layer["w_hh"] for layer in lstm]
    args += [layer["w_ih"] for layer in lstm[1:]]
    args += [layer["b"] for layer in lstm]
    args += [params["fc_w"], params["fc_b"]]

    # pre0 is streamed chunk-by-chunk (double-buffered bf16 tile).
    in_specs = [pl.BlockSpec((TC, B_tile, 4 * M), lambda i, c: (c, i, 0))]
    # Weight blocks are constant across the grid; single-buffering them
    # (pipeline_mode=pl.Buffered(1)) would save one VMEM copy each — left at
    # the default here for portability across jax versions.
    in_specs += [pl.BlockSpec((M, 4 * M), lambda i, c: (0, 0))
                 for _ in range(L)]
    in_specs += [pl.BlockSpec((M, 4 * M), lambda i, c: (0, 0))
                 for _ in range(L - 1)]
    in_specs += [pl.BlockSpec((1, 4 * M), lambda i, c: (0, 0))
                 for _ in range(L)]
    in_specs += [pl.BlockSpec((M, K), lambda i, c: (0, 0)),
                 pl.BlockSpec((1, K), lambda i, c: (0, 0))]

    scratch_shapes = [
        pltpu.VMEM((L, B_tile, M), jnp.float32),            # h per layer
        pltpu.VMEM((L, B_tile, M), jnp.float32),            # c per layer
        pltpu.VMEM((B_tile, M), jnp.float32),               # running max
    ]
    if L > 1:
        scratch_shapes += [
            pltpu.VMEM((TC * B_tile, M), jnp.bfloat16),     # hidden chunk
            pltpu.VMEM((TC * B_tile, 4 * M), jnp.float32),  # next-layer gates
        ]

    # --- VMEM budget: actual footprint + headroom, clamped to the core cap --
    bf2, f4 = 2, 4
    need = 2 * TC * B_tile * 4 * M * bf2                         # pre0 (x2)
    need += 2 * ((2 * L - 1) * M * 4 * M * bf2                   # w_hh + w_ih
                 + L * 4 * M * f4 + M * K * f4 + K * f4)         # biases, fc
    need += 2 * B_tile * K * f4                                  # output tile
    need += 2 * L * B_tile * M * f4 + B_tile * M * f4            # h/c/hmax
    if L > 1:
        need += TC * B_tile * M * bf2 + TC * B_tile * 4 * M * f4
    try:
        cap = int(pltpu.get_tpu_info().vmem_capacity_bytes)
    except Exception:
        cap = 64 * 1024 * 1024                                   # v7x worst case
    vmem_limit = min(int(cap * 0.85), max(32 * 1024 * 1024, 2 * need))

    out = pl.pallas_call(
        make_nlp_kernel(L, T, T_pad, TC, B_tile, M, K, unroll),
        out_shape=jax.ShapeDtypeStruct((B_pad, K), jnp.float32),
        grid_spec=pltpu.PrefetchScalarGridSpec(
            num_scalar_prefetch=0,
            grid=(n_btiles, NC),                 # (batch tiles, time chunks)
            in_specs=in_specs,
            out_specs=pl.BlockSpec((B_tile, K), lambda i, c: (i, 0)),
            scratch_shapes=scratch_shapes,
        ),
        compiler_params=pltpu.CompilerParams(
            dimension_semantics=("parallel", "arbitrary"),
            vmem_limit_bytes=vmem_limit,
        ),
    )(*args)
    return out[:B]


# ----------------------------------------------------------------------------
# Pure-JAX reference (mirrors the kernel's bf16-weight / f32-accum convention).
# ----------------------------------------------------------------------------
def nlp_reference(X, params):
    emb = jnp.take(params["embed"], X, axis=0)              # (B, T, D)
    B, T, _ = emb.shape
    out = emb
    for li, layer in enumerate(params["lstm"]):
        M = layer["w_hh"].shape[0]
        d_in = out.shape[-1]
        pre = jnp.dot(out.reshape(B * T, d_in).astype(jnp.bfloat16),
                      layer["w_ih"], preferred_element_type=jnp.float32)
        if li == 0:
            # kernel ships layer-0 pre-activations through HBM in bf16
            pre = pre.astype(jnp.bfloat16).astype(jnp.float32)
        pre = (pre + layer["b"]).reshape(B, T, 4 * M)
        h = jnp.zeros((B, M), jnp.float32)
        c = jnp.zeros((B, M), jnp.float32)
        hs = []
        for t in range(T):
            g = pre[:, t, :] + jnp.dot(h.astype(jnp.bfloat16), layer["w_hh"],
                                       preferred_element_type=jnp.float32)
            i_g = jax.nn.sigmoid(g[:, 0 * M:1 * M])
            f_g = jax.nn.sigmoid(g[:, 1 * M:2 * M])
            g_g = jnp.tanh(g[:, 2 * M:3 * M])
            o_g = jax.nn.sigmoid(g[:, 3 * M:4 * M])
            c = f_g * c + i_g * g_g
            h = o_g * jnp.tanh(c)
            hs.append(h)
        out = jnp.stack(hs, axis=1)                         # (B, T, M)
    hmax = jnp.max(out, axis=1)                             # (B, M)
    return (jnp.dot(hmax, params["fc_w"], preferred_element_type=jnp.float32)
            + params["fc_b"])


# ----------------------------------------------------------------------------
# Deterministic parameter init (PyTorch-style shapes; synthetic values).
# ----------------------------------------------------------------------------
def init_params(key, n_vocab, embed_dim, n_hidden, n_rnnlayers, n_outputs):
    V, D, M, L, K = n_vocab, embed_dim, n_hidden, n_rnnlayers, n_outputs
    keys = jax.random.split(key, 2 + 4 * L + 2)
    ki = iter(keys)
    bound = 1.0 / jnp.sqrt(jnp.float32(M))

    params = {}
    params["embed"] = jax.random.normal(next(ki), (V, D), jnp.float32)

    layers = []
    for layer in range(L):
        d_in = D if layer == 0 else M
        # PyTorch stores weight_ih as (4M, d_in); keep (d_in, 4M) for
        # right-multiplication on the MXU.  Matmul weights stored as bf16
        # (native MXU path, half the VMEM); accumulation stays f32.
        w_ih = jax.random.uniform(next(ki), (d_in, 4 * M), jnp.float32,
                                  -bound, bound).astype(jnp.bfloat16)
        w_hh = jax.random.uniform(next(ki), (M, 4 * M), jnp.float32,
                                  -bound, bound).astype(jnp.bfloat16)
        b_ih = jax.random.uniform(next(ki), (4 * M,), jnp.float32, -bound, bound)
        b_hh = jax.random.uniform(next(ki), (4 * M,), jnp.float32, -bound, bound)
        layers.append({"w_ih": w_ih, "w_hh": w_hh,
                       "b": (b_ih + b_hh).reshape(1, 4 * M)})
    params["lstm"] = layers

    params["fc_w"] = jax.random.uniform(next(ki), (M, K), jnp.float32,
                                        -bound, bound)
    params["fc_b"] = jax.random.uniform(next(ki), (1, K), jnp.float32,
                                        -bound, bound)
    return params


if __name__ == "__main__":
    # Small shapes consistent with the module's forward.
    V, D, M, L, K = 32, 16, 32, 2, 8     # vocab, embed, hidden, layers, outputs
    B, T = 2, 8                          # batch, sequence length

    key = jax.random.PRNGKey(0)
    pkey, xkey = jax.random.split(key)
    params = init_params(pkey, V, D, M, L, K)
    X = jax.random.randint(xkey, (B, T), 0, V, dtype=jnp.int32)

    out = jax.block_until_ready(nlp_forward(X, params))
    ref = jax.block_until_ready(nlp_reference(X, params))

    assert out.shape == (B, K)
    assert jnp.allclose(out, ref, atol=2e-3, rtol=2e-3), "mismatch vs reference"

    print("KERNEL_OK")
</pallas_src>

<mosaic_0001>
module attributes {stable_mosaic.version = 11 : i64} {
  func.func @kernel(%arg0: i32, %arg1: i32, %arg2: memref<8x8x128xbf16, #tpu.memory_space<vmem>>, %arg3: memref<32x128xbf16, #tpu.memory_space<vmem>>, %arg4: memref<32x128xbf16, #tpu.memory_space<vmem>>, %arg5: memref<32x128xbf16, #tpu.memory_space<vmem>>, %arg6: memref<1x128xf32, #tpu.memory_space<vmem>>, %arg7: memref<1x128xf32, #tpu.memory_space<vmem>>, %arg8: memref<32x8xf32, #tpu.memory_space<vmem>>, %arg9: memref<1x8xf32, #tpu.memory_space<vmem>>, %arg10: memref<8x8xf32, #tpu.memory_space<vmem>>, %arg11: memref<2x8x32xf32, #tpu.memory_space<vmem>>, %arg12: memref<2x8x32xf32, #tpu.memory_space<vmem>>, %arg13: memref<8x32xf32, #tpu.memory_space<vmem>>, %arg14: memref<64x32xbf16, #tpu.memory_space<vmem>>, %arg15: memref<64x128xf32, #tpu.memory_space<vmem>>) attributes {dimension_semantics = [#tpu.dimension_semantics<parallel>, #tpu.dimension_semantics<arbitrary>], iteration_bounds = array<i64: 1, 1>, scalar_prefetch = 0 : i64, scratch_operands = 5 : i64, tpu.core_type = #tpu.core_type<tc>, window_params = [{transform_indices = @transform_0, window_bounds = array<i64: 8, 8, 128>}, {pipeline_mode = #tpu.pipeline_mode<synchronous>, transform_indices = @transform_1, window_bounds = array<i64: 32, 128>}, {pipeline_mode = #tpu.pipeline_mode<synchronous>, transform_indices = @transform_2, window_bounds = array<i64: 32, 128>}, {pipeline_mode = #tpu.pipeline_mode<synchronous>, transform_indices = @transform_3, window_bounds = array<i64: 32, 128>}, {pipeline_mode = #tpu.pipeline_mode<synchronous>, transform_indices = @transform_4, window_bounds = array<i64: 1, 128>}, {pipeline_mode = #tpu.pipeline_mode<synchronous>, transform_indices = @transform_5, window_bounds = array<i64: 1, 128>}, {pipeline_mode = #tpu.pipeline_mode<synchronous>, transform_indices = @transform_6, window_bounds = array<i64: 32, 8>}, {pipeline_mode = #tpu.pipeline_mode<synchronous>, transform_indices = @transform_7, window_bounds = array<i64: 1, 8>}, {transform_indices = @transform_8, window_bounds = array<i64: 8, 8>}]} {
    %c0_i32 = arith.constant 0 : i32
    %0 = arith.cmpi eq, %arg1, %c0_i32 : i32
    %1 = arith.extui %0 : i1 to i32
    %c0_i32_0 = arith.constant 0 : i32
    %2 = arith.cmpi ne, %1, %c0_i32_0 : i32
    scf.if %2 {
      %cst_193 = arith.constant 0.000000e+00 : f32
      %622 = vector.broadcast %cst_193 : f32 to vector<2x8x32xf32>
      %c0_194 = arith.constant 0 : index
      %c0_195 = arith.constant 0 : index
      %c0_196 = arith.constant 0 : index
      %623 = vector.load %arg11[%c0_194, %c0_195, %c0_196] : memref<2x8x32xf32, #tpu.memory_space<vmem>>, vector<2x8x32xf32>
      tpu.vector_store %arg11[%c0_194, %c0_195, %c0_196], %622 {strides = array<i32>} : memref<2x8x32xf32, #tpu.memory_space<vmem>>, vector<2x8x32xf32>,
      %cst_197 = arith.constant 0.000000e+00 : f32
      %624 = vector.broadcast %cst_197 : f32 to vector<2x8x32xf32>
      %c0_198 = arith.constant 0 : index
      %c0_199 = arith.constant 0 : index
      %c0_200 = arith.constant 0 : index
      %625 = vector.load %arg12[%c0_198, %c0_199, %c0_200] : memref<2x8x32xf32, #tpu.memory_space<vmem>>, vector<2x8x32xf32>
      tpu.vector_store %arg12[%c0_198, %c0_199, %c0_200], %624 {strides = array<i32>} : memref<2x8x32xf32, #tpu.memory_space<vmem>>, vector<2x8x32xf32>,
      %cst_201 = arith.constant 0xFF800000 : f32
      %626 = vector.broadcast %cst_201 : f32 to vector<8x32xf32>
      %c0_202 = arith.constant 0 : index
      %c0_203 = arith.constant 0 : index
      %627 = vector.load %arg13[%c0_202, %c0_203] : memref<8x32xf32, #tpu.memory_space<vmem>>, vector<8x32xf32>
      tpu.vector_store %arg13[%c0_202, %c0_203], %626 {strides = array<i32>} : memref<8x32xf32, #tpu.memory_space<vmem>>, vector<8x32xf32>,
    } else {
    }
    %c0 = arith.constant 0 : index
    %c0_1 = arith.constant 0 : index
    %c0_2 = arith.constant 0 : index
    %3 = vector.load %arg11[%c0, %c0_1, %c0_2] : memref<2x8x32xf32, #tpu.memory_space<vmem>>, vector<1x8x32xf32>
    %4 = vector.shape_cast %3 : vector<1x8x32xf32> to vector<8x32xf32>
    %c0_3 = arith.constant 0 : index
    %c0_4 = arith.constant 0 : index
    %c0_5 = arith.constant 0 : index
    %5 = vector.load %arg12[%c0_3, %c0_4, %c0_5] : memref<2x8x32xf32, #tpu.memory_space<vmem>>, vector<1x8x32xf32>
    %6 = vector.shape_cast %5 : vector<1x8x32xf32> to vector<8x32xf32>
    %c0_6 = arith.constant 0 : index
    %c0_7 = arith.constant 0 : index
    %7 = vector.load %arg6[%c0_6, %c0_7] : memref<1x128xf32, #tpu.memory_space<vmem>>, vector<1x128xf32>
    %8 = vector.shape_cast %7 : vector<1x128xf32> to vector<1x128xf32>
    %9 = vector.broadcast %8 : vector<1x128xf32> to vector<8x128xf32>
    %c0_i32_8 = arith.constant 0 : i32
    %10 = arith.index_cast %c0_i32_8 : i32 to index
    %c0_9 = arith.constant 0 : index
    %c0_10 = arith.constant 0 : index
    %11 = vector.load %arg2[%10, %c0_9, %c0_10] : memref<8x8x128xbf16, #tpu.memory_space<vmem>>, vector<1x8x128xbf16>
    %12 = vector.shape_cast %11 : vector<1x8x128xbf16> to vector<8x128xbf16>
    %13 = arith.extf %12 : vector<8x128xbf16> to vector<8x128xf32>
    %14 = arith.addf %13, %9 : vector<8x128xf32>
    %15 = arith.truncf %4 : vector<8x32xf32> to vector<8x32xbf16>
    %c0_11 = arith.constant 0 : index
    %c0_12 = arith.constant 0 : index
    %16 = vector.load %arg3[%c0_11, %c0_12] : memref<32x128xbf16, #tpu.memory_space<vmem>>, vector<32x128xbf16>
    %cst = arith.constant dense<0.000000e+00> : vector<8x128xf32>
    %17 = tpu.matmul %15, %16, %cst {dimension_numbers = #tpu.dot_dimension_numbers<[1], [0], [0], [1], [0, 0, 1, 1], [], []>} : vector<8x32xbf16>, vector<32x128xbf16>, vector<8x128xf32> -> vector<8x128xf32>
    %18 = arith.addf %14, %17 : vector<8x128xf32>
    %19 = vector.extract_strided_slice %18 {offsets = [0, 0], sizes = [8, 32], strides = [1, 1]} : vector<8x128xf32> to vector<8x32xf32>
    %20 = arith.negf %19 : vector<8x32xf32>
    %21 = math.exp %20 : vector<8x32xf32>
    %cst_13 = arith.constant 1.000000e+00 : f32
    %22 = vector.broadcast %cst_13 : f32 to vector<8x32xf32>
    %23 = arith.addf %22, %21 : vector<8x32xf32>
    %24 = arith.divf %22, %23 : vector<8x32xf32>
    %25 = vector.extract_strided_slice %18 {offsets = [0, 32], sizes = [8, 32], strides = [1, 1]} : vector<8x128xf32> to vector<8x32xf32>
    %26 = arith.negf %25 : vector<8x32xf32>
    %27 = math.exp %26 : vector<8x32xf32>
    %cst_14 = arith.constant 1.000000e+00 : f32
    %28 = vector.broadcast %cst_14 : f32 to vector<8x32xf32>
    %29 = arith.addf %28, %27 : vector<8x32xf32>
    %30 = arith.divf %28, %29 : vector<8x32xf32>
    %31 = vector.extract_strided_slice %18 {offsets = [0, 64], sizes = [8, 32], strides = [1, 1]} : vector<8x128xf32> to vector<8x32xf32>
    %32 = math.tanh %31 : vector<8x32xf32>
    %33 = vector.extract_strided_slice %18 {offsets = [0, 96], sizes = [8, 32], strides = [1, 1]} : vector<8x128xf32> to vector<8x32xf32>
    %34 = arith.negf %33 : vector<8x32xf32>
    %35 = math.exp %34 : vector<8x32xf32>
    %cst_15 = arith.constant 1.000000e+00 : f32
    %36 = vector.broadcast %cst_15 : f32 to vector<8x32xf32>
    %37 = arith.addf %36, %35 : vector<8x32xf32>
    %38 = arith.divf %36, %37 : vector<8x32xf32>
    %39 = arith.mulf %30, %6 : vector<8x32xf32>
    %40 = arith.mulf %24, %32 : vector<8x32xf32>
    %41 = arith.addf %39, %40 : vector<8x32xf32>
    %42 = math.tanh %41 : vector<8x32xf32>
    %43 = arith.mulf %38, %42 : vector<8x32xf32>
    %c8_i32 = arith.constant 8 : i32
    %44 = arith.muli %c0_i32_8, %c8_i32 : i32
    %45 = tpu.assume_multiple %44, 8 : i32
    %46 = arith.truncf %43 : vector<8x32xf32> to vector<8x32xbf16>
    %47 = arith.index_cast %45 : i32 to index
    %c0_16 = arith.constant 0 : index
    %48 = vector.load %arg14[%47, %c0_16] : memref<64x32xbf16, #tpu.memory_space<vmem>>, vector<8x32xbf16>
    tpu.vector_store %arg14[%47, %c0_16], %46 {strides = array<i32>} : memref<64x32xbf16, #tpu.memory_space<vmem>>, vector<8x32xbf16>,
    %c1_i32 = arith.constant 1 : i32
    %49 = arith.index_cast %c1_i32 : i32 to index
    %c0_17 = arith.constant 0 : index
    %c0_18 = arith.constant 0 : index
    %50 = vector.load %arg2[%49, %c0_17, %c0_18] : memref<8x8x128xbf16, #tpu.memory_space<vmem>>, vector<1x8x128xbf16>
    %51 = vector.shape_cast %50 : vector<1x8x128xbf16> to vector<8x128xbf16>
    %52 = arith.extf %51 : vector<8x128xbf16> to vector<8x128xf32>
    %53 = arith.addf %52, %9 : vector<8x128xf32>
    %54 = arith.truncf %43 : vector<8x32xf32> to vector<8x32xbf16>
    %c0_19 = arith.constant 0 : index
    %c0_20 = arith.constant 0 : index
    %55 = vector.load %arg3[%c0_19, %c0_20] : memref<32x128xbf16, #tpu.memory_space<vmem>>, vector<32x128xbf16>
    %cst_21 = arith.constant dense<0.000000e+00> : vector<8x128xf32>
    %56 = tpu.matmul %54, %55, %cst_21 {dimension_numbers = #tpu.dot_dimension_numbers<[1], [0], [0], [1], [0, 0, 1, 1], [], []>} : vector<8x32xbf16>, vector<32x128xbf16>, vector<8x128xf32> -> vector<8x128xf32>
    %57 = arith.addf %53, %56 : vector<8x128xf32>
    %58 = vector.extract_strided_slice %57 {offsets = [0, 0], sizes = [8, 32], strides = [1, 1]} : vector<8x128xf32> to vector<8x32xf32>
    %59 = arith.negf %58 : vector<8x32xf32>
    %60 = math.exp %59 : vector<8x32xf32>
    %cst_22 = arith.constant 1.000000e+00 : f32
    %61 = vector.broadcast %cst_22 : f32 to vector<8x32xf32>
    %62 = arith.addf %61, %60 : vector<8x32xf32>
    %63 = arith.divf %61, %62 : vector<8x32xf32>
    %64 = vector.extract_strided_slice %57 {offsets = [0, 32], sizes = [8, 32], strides = [1, 1]} : vector<8x128xf32> to vector<8x32xf32>
    %65 = arith.negf %64 : vector<8x32xf32>
    %66 = math.exp %65 : vector<8x32xf32>
    %cst_23 = arith.constant 1.000000e+00 : f32
    %67 = vector.broadcast %cst_23 : f32 to vector<8x32xf32>
    %68 = arith.addf %67, %66 : vector<8x32xf32>
    %69 = arith.divf %67, %68 : vector<8x32xf32>
    %70 = vector.extract_strided_slice %57 {offsets = [0, 64], sizes = [8, 32], strides = [1, 1]} : vector<8x128xf32> to vector<8x32xf32>
    %71 = math.tanh %70 : vector<8x32xf32>
    %72 = vector.extract_strided_slice %57 {offsets = [0, 96], sizes = [8, 32], strides = [1, 1]} : vector<8x128xf32> to vector<8x32xf32>
    %73 = arith.negf %72 : vector<8x32xf32>
    %74 = math.exp %73 : vector<8x32xf32>
    %cst_24 = arith.constant 1.000000e+00 : f32
    %75 = vector.broadcast %cst_24 : f32 to vector<8x32xf32>
    %76 = arith.addf %75, %74 : vector<8x32xf32>
    %77 = arith.divf %75, %76 : vector<8x32xf32>
    %78 = arith.mulf %69, %41 : vector<8x32xf32>
    %79 = arith.mulf %63, %71 : vector<8x32xf32>
    %80 = arith.addf %78, %79 : vector<8x32xf32>
    %81 = math.tanh %80 : vector<8x32xf32>
    %82 = arith.mulf %77, %81 : vector<8x32xf32>
    %c8_i32_25 = arith.constant 8 : i32
    %83 = arith.muli %c1_i32, %c8_i32_25 : i32
    %84 = tpu.assume_multiple %83, 8 : i32
    %85 = arith.truncf %82 : vector<8x32xf32> to vector<8x32xbf16>
    %86 = arith.index_cast %84 : i32 to index
    %c0_26 = arith.constant 0 : index
    %87 = vector.load %arg14[%86, %c0_26] : memref<64x32xbf16, #tpu.memory_space<vmem>>, vector<8x32xbf16>
    tpu.vector_store %arg14[%86, %c0_26], %85 {strides = array<i32>} : memref<64x32xbf16, #tpu.memory_space<vmem>>, vector<8x32xbf16>,
    %c2_i32 = arith.constant 2 : i32
    %88 = arith.index_cast %c2_i32 : i32 to index
    %c0_27 = arith.constant 0 : index
    %c0_28 = arith.constant 0 : index
    %89 = vector.load %arg2[%88, %c0_27, %c0_28] : memref<8x8x128xbf16, #tpu.memory_space<vmem>>, vector<1x8x128xbf16>
    %90 = vector.shape_cast %89 : vector<1x8x128xbf16> to vector<8x128xbf16>
    %91 = arith.extf %90 : vector<8x128xbf16> to vector<8x128xf32>
    %92 = arith.addf %91, %9 : vector<8x128xf32>
    %93 = arith.truncf %82 : vector<8x32xf32> to vector<8x32xbf16>
    %c0_29 = arith.constant 0 : index
    %c0_30 = arith.constant 0 : index
    %94 = vector.load %arg3[%c0_29, %c0_30] : memref<32x128xbf16, #tpu.memory_space<vmem>>, vector<32x128xbf16>
    %cst_31 = arith.constant dense<0.000000e+00> : vector<8x128xf32>
    %95 = tpu.matmul %93, %94, %cst_31 {dimension_numbers = #tpu.dot_dimension_numbers<[1], [0], [0], [1], [0, 0, 1, 1], [], []>} : vector<8x32xbf16>, vector<32x128xbf16>, vector<8x128xf32> -> vector<8x128xf32>
    %96 = arith.addf %92, %95 : vector<8x128xf32>
    %97 = vector.extract_strided_slice %96 {offsets = [0, 0], sizes = [8, 32], strides = [1, 1]} : vector<8x128xf32> to vector<8x32xf32>
    %98 = arith.negf %97 : vector<8x32xf32>
    %99 = math.exp %98 : vector<8x32xf32>
    %cst_32 = arith.constant 1.000000e+00 : f32
    %100 = vector.broadcast %cst_32 : f32 to vector<8x32xf32>
    %101 = arith.addf %100, %99 : vector<8x32xf32>
    %102 = arith.divf %100, %101 : vector<8x32xf32>
    %103 = vector.extract_strided_slice %96 {offsets = [0, 32], sizes = [8, 32], strides = [1, 1]} : vector<8x128xf32> to vector<8x32xf32>
    %104 = arith.negf %103 : vector<8x32xf32>
    %105 = math.exp %104 : vector<8x32xf32>
    %cst_33 = arith.constant 1.000000e+00 : f32
    %106 = vector.broadcast %cst_33 : f32 to vector<8x32xf32>
    %107 = arith.addf %106, %105 : vector<8x32xf32>
    %108 = arith.divf %106, %107 : vector<8x32xf32>
    %109 = vector.extract_strided_slice %96 {offsets = [0, 64], sizes = [8, 32], strides = [1, 1]} : vector<8x128xf32> to vector<8x32xf32>
    %110 = math.tanh %109 : vector<8x32xf32>
    %111 = vector.extract_strided_slice %96 {offsets = [0, 96], sizes = [8, 32], strides = [1, 1]} : vector<8x128xf32> to vector<8x32xf32>
    %112 = arith.negf %111 : vector<8x32xf32>
    %113 = math.exp %112 : vector<8x32xf32>
    %cst_34 = arith.constant 1.000000e+00 : f32
    %114 = vector.broadcast %cst_34 : f32 to vector<8x32xf32>
    %115 = arith.addf %114, %113 : vector<8x32xf32>
    %116 = arith.divf %114, %115 : vector<8x32xf32>
    %117 = arith.mulf %108, %80 : vector<8x32xf32>
    %118 = arith.mulf %102, %110 : vector<8x32xf32>
    %119 = arith.addf %117, %118 : vector<8x32xf32>
    %120 = math.tanh %119 : vector<8x32xf32>
    %121 = arith.mulf %116, %120 : vector<8x32xf32>
    %c8_i32_35 = arith.constant 8 : i32
    %122 = arith.muli %c2_i32, %c8_i32_35 : i32
    %123 = tpu.assume_multiple %122, 8 : i32
    %124 = arith.truncf %121 : vector<8x32xf32> to vector<8x32xbf16>
    %125 = arith.index_cast %123 : i32 to index
    %c0_36 = arith.constant 0 : index
    %126 = vector.load %arg14[%125, %c0_36] : memref<64x32xbf16, #tpu.memory_space<vmem>>, vector<8x32xbf16>
    tpu.vector_store %arg14[%125, %c0_36], %124 {strides = array<i32>} : memref<64x32xbf16, #tpu.memory_space<vmem>>, vector<8x32xbf16>,
    %c3_i32 = arith.constant 3 : i32
    %127 = arith.index_cast %c3_i32 : i32 to index
    %c0_37 = arith.constant 0 : index
    %c0_38 = arith.constant 0 : index
    %128 = vector.load %arg2[%127, %c0_37, %c0_38] : memref<8x8x128xbf16, #tpu.memory_space<vmem>>, vector<1x8x128xbf16>
    %129 = vector.shape_cast %128 : vector<1x8x128xbf16> to vector<8x128xbf16>
    %130 = arith.extf %129 : vector<8x128xbf16> to vector<8x128xf32>
    %131 = arith.addf %130, %9 : vector<8x128xf32>
    %132 = arith.truncf %121 : vector<8x32xf32> to vector<8x32xbf16>
    %c0_39 = arith.constant 0 : index
    %c0_40 = arith.constant 0 : index
    %133 = vector.load %arg3[%c0_39, %c0_40] : memref<32x128xbf16, #tpu.memory_space<vmem>>, vector<32x128xbf16>
    %cst_41 = arith.constant dense<0.000000e+00> : vector<8x128xf32>
    %134 = tpu.matmul %132, %133, %cst_41 {dimension_numbers = #tpu.dot_dimension_numbers<[1], [0], [0], [1], [0, 0, 1, 1], [], []>} : vector<8x32xbf16>, vector<32x128xbf16>, vector<8x128xf32> -> vector<8x128xf32>
    %135 = arith.addf %131, %134 : vector<8x128xf32>
    %136 = vector.extract_strided_slice %135 {offsets = [0, 0], sizes = [8, 32], strides = [1, 1]} : vector<8x128xf32> to vector<8x32xf32>
    %137 = arith.negf %136 : vector<8x32xf32>
    %138 = math.exp %137 : vector<8x32xf32>
    %cst_42 = arith.constant 1.000000e+00 : f32
    %139 = vector.broadcast %cst_42 : f32 to vector<8x32xf32>
    %140 = arith.addf %139, %138 : vector<8x32xf32>
    %141 = arith.divf %139, %140 : vector<8x32xf32>
    %142 = vector.extract_strided_slice %135 {offsets = [0, 32], sizes = [8, 32], strides = [1, 1]} : vector<8x128xf32> to vector<8x32xf32>
    %143 = arith.negf %142 : vector<8x32xf32>
    %144 = math.exp %143 : vector<8x32xf32>
    %cst_43 = arith.constant 1.000000e+00 : f32
    %145 = vector.broadcast %cst_43 : f32 to vector<8x32xf32>
    %146 = arith.addf %145, %144 : vector<8x32xf32>
    %147 = arith.divf %145, %146 : vector<8x32xf32>
    %148 = vector.extract_strided_slice %135 {offsets = [0, 64], sizes = [8, 32], strides = [1, 1]} : vector<8x128xf32> to vector<8x32xf32>
    %149 = math.tanh %148 : vector<8x32xf32>
    %150 = vector.extract_strided_slice %135 {offsets = [0, 96], sizes = [8, 32], strides = [1, 1]} : vector<8x128xf32> to vector<8x32xf32>
    %151 = arith.negf %150 : vector<8x32xf32>
    %152 = math.exp %151 : vector<8x32xf32>
    %cst_44 = arith.constant 1.000000e+00 : f32
    %153 = vector.broadcast %cst_44 : f32 to vector<8x32xf32>
    %154 = arith.addf %153, %152 : vector<8x32xf32>
    %155 = arith.divf %153, %154 : vector<8x32xf32>
    %156 = arith.mulf %147, %119 : vector<8x32xf32>
    %157 = arith.mulf %141, %149 : vector<8x32xf32>
    %158 = arith.addf %156, %157 : vector<8x32xf32>
    %159 = math.tanh %158 : vector<8x32xf32>
    %160 = arith.mulf %155, %159 : vector<8x32xf32>
    %c8_i32_45 = arith.constant 8 : i32
    %161 = arith.muli %c3_i32, %c8_i32_45 : i32
    %162 = tpu.assume_multiple %161, 8 : i32
    %163 = arith.truncf %160 : vector<8x32xf32> to vector<8x32xbf16>
    %164 = arith.index_cast %162 : i32 to index
    %c0_46 = arith.constant 0 : index
    %165 = vector.load %arg14[%164, %c0_46] : memref<64x32xbf16, #tpu.memory_space<vmem>>, vector<8x32xbf16>
    tpu.vector_store %arg14[%164, %c0_46], %163 {strides = array<i32>} : memref<64x32xbf16, #tpu.memory_space<vmem>>, vector<8x32xbf16>,
    %c4_i32 = arith.constant 4 : i32
    %166 = arith.index_cast %c4_i32 : i32 to index
    %c0_47 = arith.constant 0 : index
    %c0_48 = arith.constant 0 : index
    %167 = vector.load %arg2[%166, %c0_47, %c0_48] : memref<8x8x128xbf16, #tpu.memory_space<vmem>>, vector<1x8x128xbf16>
    %168 = vector.shape_cast %167 : vector<1x8x128xbf16> to vector<8x128xbf16>
    %169 = arith.extf %168 : vector<8x128xbf16> to vector<8x128xf32>
    %170 = arith.addf %169, %9 : vector<8x128xf32>
    %171 = arith.truncf %160 : vector<8x32xf32> to vector<8x32xbf16>
    %c0_49 = arith.constant 0 : index
    %c0_50 = arith.constant 0 : index
    %172 = vector.load %arg3[%c0_49, %c0_50] : memref<32x128xbf16, #tpu.memory_space<vmem>>, vector<32x128xbf16>
    %cst_51 = arith.constant dense<0.000000e+00> : vector<8x128xf32>
    %173 = tpu.matmul %171, %172, %cst_51 {dimension_numbers = #tpu.dot_dimension_numbers<[1], [0], [0], [1], [0, 0, 1, 1], [], []>} : vector<8x32xbf16>, vector<32x128xbf16>, vector<8x128xf32> -> vector<8x128xf32>
    %174 = arith.addf %170, %173 : vector<8x128xf32>
    %175 = vector.extract_strided_slice %174 {offsets = [0, 0], sizes = [8, 32], strides = [1, 1]} : vector<8x128xf32> to vector<8x32xf32>
    %176 = arith.negf %175 : vector<8x32xf32>
    %177 = math.exp %176 : vector<8x32xf32>
    %cst_52 = arith.constant 1.000000e+00 : f32
    %178 = vector.broadcast %cst_52 : f32 to vector<8x32xf32>
    %179 = arith.addf %178, %177 : vector<8x32xf32>
    %180 = arith.divf %178, %179 : vector<8x32xf32>
    %181 = vector.extract_strided_slice %174 {offsets = [0, 32], sizes = [8, 32], strides = [1, 1]} : vector<8x128xf32> to vector<8x32xf32>
    %182 = arith.negf %181 : vector<8x32xf32>
    %183 = math.exp %182 : vector<8x32xf32>
    %cst_53 = arith.constant 1.000000e+00 : f32
    %184 = vector.broadcast %cst_53 : f32 to vector<8x32xf32>
    %185 = arith.addf %184, %183 : vector<8x32xf32>
    %186 = arith.divf %184, %185 : vector<8x32xf32>
    %187 = vector.extract_strided_slice %174 {offsets = [0, 64], sizes = [8, 32], strides = [1, 1]} : vector<8x128xf32> to vector<8x32xf32>
    %188 = math.tanh %187 : vector<8x32xf32>
    %189 = vector.extract_strided_slice %174 {offsets = [0, 96], sizes = [8, 32], strides = [1, 1]} : vector<8x128xf32> to vector<8x32xf32>
    %190 = arith.negf %189 : vector<8x32xf32>
    %191 = math.exp %190 : vector<8x32xf32>
    %cst_54 = arith.constant 1.000000e+00 : f32
    %192 = vector.broadcast %cst_54 : f32 to vector<8x32xf32>
    %193 = arith.addf %192, %191 : vector<8x32xf32>
    %194 = arith.divf %192, %193 : vector<8x32xf32>
    %195 = arith.mulf %186, %158 : vector<8x32xf32>
    %196 = arith.mulf %180, %188 : vector<8x32xf32>
    %197 = arith.addf %195, %196 : vector<8x32xf32>
    %198 = math.tanh %197 : vector<8x32xf32>
    %199 = arith.mulf %194, %198 : vector<8x32xf32>
    %c8_i32_55 = arith.constant 8 : i32
    %200 = arith.muli %c4_i32, %c8_i32_55 : i32
    %201 = tpu.assume_multiple %200, 8 : i32
    %202 = arith.truncf %199 : vector<8x32xf32> to vector<8x32xbf16>
    %203 = arith.index_cast %201 : i32 to index
    %c0_56 = arith.constant 0 : index
    %204 = vector.load %arg14[%203, %c0_56] : memref<64x32xbf16, #tpu.memory_space<vmem>>, vector<8x32xbf16>
    tpu.vector_store %arg14[%203, %c0_56], %202 {strides = array<i32>} : memref<64x32xbf16, #tpu.memory_space<vmem>>, vector<8x32xbf16>,
    %c5_i32 = arith.constant 5 : i32
    %205 = arith.index_cast %c5_i32 : i32 to index
    %c0_57 = arith.constant 0 : index
    %c0_58 = arith.constant 0 : index
    %206 = vector.load %arg2[%205, %c0_57, %c0_58] : memref<8x8x128xbf16, #tpu.memory_space<vmem>>, vector<1x8x128xbf16>
    %207 = vector.shape_cast %206 : vector<1x8x128xbf16> to vector<8x128xbf16>
    %208 = arith.extf %207 : vector<8x128xbf16> to vector<8x128xf32>
    %209 = arith.addf %208, %9 : vector<8x128xf32>
    %210 = arith.truncf %199 : vector<8x32xf32> to vector<8x32xbf16>
    %c0_59 = arith.constant 0 : index
    %c0_60 = arith.constant 0 : index
    %211 = vector.load %arg3[%c0_59, %c0_60] : memref<32x128xbf16, #tpu.memory_space<vmem>>, vector<32x128xbf16>
    %cst_61 = arith.constant dense<0.000000e+00> : vector<8x128xf32>
    %212 = tpu.matmul %210, %211, %cst_61 {dimension_numbers = #tpu.dot_dimension_numbers<[1], [0], [0], [1], [0, 0, 1, 1], [], []>} : vector<8x32xbf16>, vector<32x128xbf16>, vector<8x128xf32> -> vector<8x128xf32>
    %213 = arith.addf %209, %212 : vector<8x128xf32>
    %214 = vector.extract_strided_slice %213 {offsets = [0, 0], sizes = [8, 32], strides = [1, 1]} : vector<8x128xf32> to vector<8x32xf32>
    %215 = arith.negf %214 : vector<8x32xf32>
    %216 = math.exp %215 : vector<8x32xf32>
    %cst_62 = arith.constant 1.000000e+00 : f32
    %217 = vector.broadcast %cst_62 : f32 to vector<8x32xf32>
    %218 = arith.addf %217, %216 : vector<8x32xf32>
    %219 = arith.divf %217, %218 : vector<8x32xf32>
    %220 = vector.extract_strided_slice %213 {offsets = [0, 32], sizes = [8, 32], strides = [1, 1]} : vector<8x128xf32> to vector<8x32xf32>
    %221 = arith.negf %220 : vector<8x32xf32>
    %222 = math.exp %221 : vector<8x32xf32>
    %cst_63 = arith.constant 1.000000e+00 : f32
    %223 = vector.broadcast %cst_63 : f32 to vector<8x32xf32>
    %224 = arith.addf %223, %222 : vector<8x32xf32>
    %225 = arith.divf %223, %224 : vector<8x32xf32>
    %226 = vector.extract_strided_slice %213 {offsets = [0, 64], sizes = [8, 32], strides = [1, 1]} : vector<8x128xf32> to vector<8x32xf32>
    %227 = math.tanh %226 : vector<8x32xf32>
    %228 = vector.extract_strided_slice %213 {offsets = [0, 96], sizes = [8, 32], strides = [1, 1]} : vector<8x128xf32> to vector<8x32xf32>
    %229 = arith.negf %228 : vector<8x32xf32>
    %230 = math.exp %229 : vector<8x32xf32>
    %cst_64 = arith.constant 1.000000e+00 : f32
    %231 = vector.broadcast %cst_64 : f32 to vector<8x32xf32>
    %232 = arith.addf %231, %230 : vector<8x32xf32>
    %233 = arith.divf %231, %232 : vector<8x32xf32>
    %234 = arith.mulf %225, %197 : vector<8x32xf32>
    %235 = arith.mulf %219, %227 : vector<8x32xf32>
    %236 = arith.addf %234, %235 : vector<8x32xf32>
    %237 = math.tanh %236 : vector<8x32xf32>
    %238 = arith.mulf %233, %237 : vector<8x32xf32>
    %c8_i32_65 = arith.constant 8 : i32
    %239 = arith.muli %c5_i32, %c8_i32_65 : i32
    %240 = tpu.assume_multiple %239, 8 : i32
    %241 = arith.truncf %238 : vector<8x32xf32> to vector<8x32xbf16>
    %242 = arith.index_cast %240 : i32 to index
    %c0_66 = arith.constant 0 : index
    %243 = vector.load %arg14[%242, %c0_66] : memref<64x32xbf16, #tpu.memory_space<vmem>>, vector<8x32xbf16>
    tpu.vector_store %arg14[%242, %c0_66], %241 {strides = array<i32>} : memref<64x32xbf16, #tpu.memory_space<vmem>>, vector<8x32xbf16>,
    %c6_i32 = arith.constant 6 : i32
    %244 = arith.index_cast %c6_i32 : i32 to index
    %c0_67 = arith.constant 0 : index
    %c0_68 = arith.constant 0 : index
    %245 = vector.load %arg2[%244, %c0_67, %c0_68] : memref<8x8x128xbf16, #tpu.memory_space<vmem>>, vector<1x8x128xbf16>
    %246 = vector.shape_cast %245 : vector<1x8x128xbf16> to vector<8x128xbf16>
    %247 = arith.extf %246 : vector<8x128xbf16> to vector<8x128xf32>
    %248 = arith.addf %247, %9 : vector<8x128xf32>
    %249 = arith.truncf %238 : vector<8x32xf32> to vector<8x32xbf16>
    %c0_69 = arith.constant 0 : index
    %c0_70 = arith.constant 0 : index
    %250 = vector.load %arg3[%c0_69, %c0_70] : memref<32x128xbf16, #tpu.memory_space<vmem>>, vector<32x128xbf16>
    %cst_71 = arith.constant dense<0.000000e+00> : vector<8x128xf32>
    %251 = tpu.matmul %249, %250, %cst_71 {dimension_numbers = #tpu.dot_dimension_numbers<[1], [0], [0], [1], [0, 0, 1, 1], [], []>} : vector<8x32xbf16>, vector<32x128xbf16>, vector<8x128xf32> -> vector<8x128xf32>
    %252 = arith.addf %248, %251 : vector<8x128xf32>
    %253 = vector.extract_strided_slice %252 {offsets = [0, 0], sizes = [8, 32], strides = [1, 1]} : vector<8x128xf32> to vector<8x32xf32>
    %254 = arith.negf %253 : vector<8x32xf32>
    %255 = math.exp %254 : vector<8x32xf32>
    %cst_72 = arith.constant 1.000000e+00 : f32
    %256 = vector.broadcast %cst_72 : f32 to vector<8x32xf32>
    %257 = arith.addf %256, %255 : vector<8x32xf32>
    %258 = arith.divf %256, %257 : vector<8x32xf32>
    %259 = vector.extract_strided_slice %252 {offsets = [0, 32], sizes = [8, 32], strides = [1, 1]} : vector<8x128xf32> to vector<8x32xf32>
    %260 = arith.negf %259 : vector<8x32xf32>
    %261 = math.exp %260 : vector<8x32xf32>
    %cst_73 = arith.constant 1.000000e+00 : f32
    %262 = vector.broadcast %cst_73 : f32 to vector<8x32xf32>
    %263 = arith.addf %262, %261 : vector<8x32xf32>
    %264 = arith.divf %262, %263 : vector<8x32xf32>
    %265 = vector.extract_strided_slice %252 {offsets = [0, 64], sizes = [8, 32], strides = [1, 1]} : vector<8x128xf32> to vector<8x32xf32>
    %266 = math.tanh %265 : vector<8x32xf32>
    %267 = vector.extract_strided_slice %252 {offsets = [0, 96], sizes = [8, 32], strides = [1, 1]} : vector<8x128xf32> to vector<8x32xf32>
    %268 = arith.negf %267 : vector<8x32xf32>
    %269 = math.exp %268 : vector<8x32xf32>
    %cst_74 = arith.constant 1.000000e+00 : f32
    %270 = vector.broadcast %cst_74 : f32 to vector<8x32xf32>
    %271 = arith.addf %270, %269 : vector<8x32xf32>
    %272 = arith.divf %270, %271 : vector<8x32xf32>
    %273 = arith.mulf %264, %236 : vector<8x32xf32>
    %274 = arith.mulf %258, %266 : vector<8x32xf32>
    %275 = arith.addf %273, %274 : vector<8x32xf32>
    %276 = math.tanh %275 : vector<8x32xf32>
    %277 = arith.mulf %272, %276 : vector<8x32xf32>
    %c8_i32_75 = arith.constant 8 : i32
    %278 = arith.muli %c6_i32, %c8_i32_75 : i32
    %279 = tpu.assume_multiple %278, 8 : i32
    %280 = arith.truncf %277 : vector<8x32xf32> to vector<8x32xbf16>
    %281 = arith.index_cast %279 : i32 to index
    %c0_76 = arith.constant 0 : index
    %282 = vector.load %arg14[%281, %c0_76] : memref<64x32xbf16, #tpu.memory_space<vmem>>, vector<8x32xbf16>
    tpu.vector_store %arg14[%281, %c0_76], %280 {strides = array<i32>} : memref<64x32xbf16, #tpu.memory_space<vmem>>, vector<8x32xbf16>,
    %c7_i32 = arith.constant 7 : i32
    %283 = arith.index_cast %c7_i32 : i32 to index
    %c0_77 = arith.constant 0 : index
    %c0_78 = arith.constant 0 : index
    %284 = vector.load %arg2[%283, %c0_77, %c0_78] : memref<8x8x128xbf16, #tpu.memory_space<vmem>>, vector<1x8x128xbf16>
    %285 = vector.shape_cast %284 : vector<1x8x128xbf16> to vector<8x128xbf16>
    %286 = arith.extf %285 : vector<8x128xbf16> to vector<8x128xf32>
    %287 = arith.addf %286, %9 : vector<8x128xf32>
    %288 = arith.truncf %277 : vector<8x32xf32> to vector<8x32xbf16>
    %c0_79 = arith.constant 0 : index
    %c0_80 = arith.constant 0 : index
    %289 = vector.load %arg3[%c0_79, %c0_80] : memref<32x128xbf16, #tpu.memory_space<vmem>>, vector<32x128xbf16>
    %cst_81 = arith.constant dense<0.000000e+00> : vector<8x128xf32>
    %290 = tpu.matmul %288, %289, %cst_81 {dimension_numbers = #tpu.dot_dimension_numbers<[1], [0], [0], [1], [0, 0, 1, 1], [], []>} : vector<8x32xbf16>, vector<32x128xbf16>, vector<8x128xf32> -> vector<8x128xf32>
    %291 = arith.addf %287, %290 : vector<8x128xf32>
    %292 = vector.extract_strided_slice %291 {offsets = [0, 0], sizes = [8, 32], strides = [1, 1]} : vector<8x128xf32> to vector<8x32xf32>
    %293 = arith.negf %292 : vector<8x32xf32>
    %294 = math.exp %293 : vector<8x32xf32>
    %cst_82 = arith.constant 1.000000e+00 : f32
    %295 = vector.broadcast %cst_82 : f32 to vector<8x32xf32>
    %296 = arith.addf %295, %294 : vector<8x32xf32>
    %297 = arith.divf %295, %296 : vector<8x32xf32>
    %298 = vector.extract_strided_slice %291 {offsets = [0, 32], sizes = [8, 32], strides = [1, 1]} : vector<8x128xf32> to vector<8x32xf32>
    %299 = arith.negf %298 : vector<8x32xf32>
    %300 = math.exp %299 : vector<8x32xf32>
    %cst_83 = arith.constant 1.000000e+00 : f32
    %301 = vector.broadcast %cst_83 : f32 to vector<8x32xf32>
    %302 = arith.addf %301, %300 : vector<8x32xf32>
    %303 = arith.divf %301, %302 : vector<8x32xf32>
    %304 = vector.extract_strided_slice %291 {offsets = [0, 64], sizes = [8, 32], strides = [1, 1]} : vector<8x128xf32> to vector<8x32xf32>
    %305 = math.tanh %304 : vector<8x32xf32>
    %306 = vector.extract_strided_slice %291 {offsets = [0, 96], sizes = [8, 32], strides = [1, 1]} : vector<8x128xf32> to vector<8x32xf32>
    %307 = arith.negf %306 : vector<8x32xf32>
    %308 = math.exp %307 : vector<8x32xf32>
    %cst_84 = arith.constant 1.000000e+00 : f32
    %309 = vector.broadcast %cst_84 : f32 to vector<8x32xf32>
    %310 = arith.addf %309, %308 : vector<8x32xf32>
    %311 = arith.divf %309, %310 : vector<8x32xf32>
    %312 = arith.mulf %303, %275 : vector<8x32xf32>
    %313 = arith.mulf %297, %305 : vector<8x32xf32>
    %314 = arith.addf %312, %313 : vector<8x32xf32>
    %315 = math.tanh %314 : vector<8x32xf32>
    %316 = arith.mulf %311, %315 : vector<8x32xf32>
    %c8_i32_85 = arith.constant 8 : i32
    %317 = arith.muli %c7_i32, %c8_i32_85 : i32
    %318 = tpu.assume_multiple %317, 8 : i32
    %319 = arith.truncf %316 : vector<8x32xf32> to vector<8x32xbf16>
    %320 = arith.index_cast %318 : i32 to index
    %c0_86 = arith.constant 0 : index
    %321 = vector.load %arg14[%320, %c0_86] : memref<64x32xbf16, #tpu.memory_space<vmem>>, vector<8x32xbf16>
    tpu.vector_store %arg14[%320, %c0_86], %319 {strides = array<i32>} : memref<64x32xbf16, #tpu.memory_space<vmem>>, vector<8x32xbf16>,
    %c8_i32_87 = arith.constant 8 : i32
    %c0_88 = arith.constant 0 : index
    %c0_89 = arith.constant 0 : index
    %322 = vector.load %arg14[%c0_88, %c0_89] : memref<64x32xbf16, #tpu.memory_space<vmem>>, vector<64x32xbf16>
    %c0_90 = arith.constant 0 : index
    %c0_91 = arith.constant 0 : index
    %323 = vector.load %arg5[%c0_90, %c0_91] : memref<32x128xbf16, #tpu.memory_space<vmem>>, vector<32x128xbf16>
    %cst_92 = arith.constant dense<0.000000e+00> : vector<64x128xf32>
    %324 = tpu.matmul %322, %323, %cst_92 {dimension_numbers = #tpu.dot_dimension_numbers<[1], [0], [0], [1], [0, 0, 1, 1], [], []>} : vector<64x32xbf16>, vector<32x128xbf16>, vector<64x128xf32> -> vector<64x128xf32>
    %c0_93 = arith.constant 0 : index
    %c0_94 = arith.constant 0 : index
    %325 = vector.load %arg7[%c0_93, %c0_94] : memref<1x128xf32, #tpu.memory_space<vmem>>, vector<1x128xf32>
    %326 = vector.broadcast %325 : vector<1x128xf32> to vector<64x128xf32>
    %327 = arith.addf %324, %326 : vector<64x128xf32>
    %c0_95 = arith.constant 0 : index
    %c0_96 = arith.constant 0 : index
    %328 = vector.load %arg15[%c0_95, %c0_96] : memref<64x128xf32, #tpu.memory_space<vmem>>, vector<64x128xf32>
    tpu.vector_store %arg15[%c0_95, %c0_96], %327 {strides = array<i32>} : memref<64x128xf32, #tpu.memory_space<vmem>>, vector<64x128xf32>,
    %c0_97 = arith.constant 0 : index
    %c0_98 = arith.constant 0 : index
    %c0_99 = arith.constant 0 : index
    %329 = vector.load %arg11[%c0_97, %c0_98, %c0_99] : memref<2x8x32xf32, #tpu.memory_space<vmem>>, vector<1x8x32xf32>
    %330 = vector.shape_cast %329 : vector<1x8x32xf32> to vector<8x32xf32>
    %331 = vector.shape_cast %316 : vector<8x32xf32> to vector<1x8x32xf32>
    tpu.vector_store %arg11[%c0_97, %c0_98, %c0_99], %331 {strides = array<i32>} : memref<2x8x32xf32, #tpu.memory_space<vmem>>, vector<1x8x32xf32>,
    %c0_100 = arith.constant 0 : index
    %c0_101 = arith.constant 0 : index
    %c0_102 = arith.constant 0 : index
    %332 = vector.load %arg12[%c0_100, %c0_101, %c0_102] : memref<2x8x32xf32, #tpu.memory_space<vmem>>, vector<1x8x32xf32>
    %333 = vector.shape_cast %332 : vector<1x8x32xf32> to vector<8x32xf32>
    %334 = vector.shape_cast %314 : vector<8x32xf32> to vector<1x8x32xf32>
    tpu.vector_store %arg12[%c0_100, %c0_101, %c0_102], %334 {strides = array<i32>} : memref<2x8x32xf32, #tpu.memory_space<vmem>>, vector<1x8x32xf32>,
    %c1 = arith.constant 1 : index
    %c0_103 = arith.constant 0 : index
    %c0_104 = arith.constant 0 : index
    %335 = vector.load %arg11[%c1, %c0_103, %c0_104] : memref<2x8x32xf32, #tpu.memory_space<vmem>>, vector<1x8x32xf32>
    %336 = vector.shape_cast %335 : vector<1x8x32xf32> to vector<8x32xf32>
    %c1_105 = arith.constant 1 : index
    %c0_106 = arith.constant 0 : index
    %c0_107 = arith.constant 0 : index
    %337 = vector.load %arg12[%c1_105, %c0_106, %c0_107] : memref<2x8x32xf32, #tpu.memory_space<vmem>>, vector<1x8x32xf32>
    %338 = vector.shape_cast %337 : vector<1x8x32xf32> to vector<8x32xf32>
    %c0_108 = arith.constant 0 : index
    %c0_109 = arith.constant 0 : index
    %339 = vector.load %arg13[%c0_108, %c0_109] : memref<8x32xf32, #tpu.memory_space<vmem>>, vector<8x32xf32>
    %c0_i32_110 = arith.constant 0 : i32
    %c8_i32_111 = arith.constant 8 : i32
    %340 = arith.muli %c0_i32_110, %c8_i32_111 : i32
    %341 = tpu.assume_multiple %340, 8 : i32
    %342 = arith.index_cast %341 : i32 to index
    %c0_112 = arith.constant 0 : index
    %343 = vector.load %arg15[%342, %c0_112] : memref<64x128xf32, #tpu.memory_space<vmem>>, vector<8x128xf32>
    %344 = arith.truncf %336 : vector<8x32xf32> to vector<8x32xbf16>
    %c0_113 = arith.constant 0 : index
    %c0_114 = arith.constant 0 : index
    %345 = vector.load %arg4[%c0_113, %c0_114] : memref<32x128xbf16, #tpu.memory_space<vmem>>, vector<32x128xbf16>
    %cst_115 = arith.constant dense<0.000000e+00> : vector<8x128xf32>
    %346 = tpu.matmul %344, %345, %cst_115 {dimension_numbers = #tpu.dot_dimension_numbers<[1], [0], [0], [1], [0, 0, 1, 1], [], []>} : vector<8x32xbf16>, vector<32x128xbf16>, vector<8x128xf32> -> vector<8x128xf32>
    %347 = arith.addf %343, %346 : vector<8x128xf32>
    %348 = vector.extract_strided_slice %347 {offsets = [0, 0], sizes = [8, 32], strides = [1, 1]} : vector<8x128xf32> to vector<8x32xf32>
    %349 = arith.negf %348 : vector<8x32xf32>
    %350 = math.exp %349 : vector<8x32xf32>
    %cst_116 = arith.constant 1.000000e+00 : f32
    %351 = vector.broadcast %cst_116 : f32 to vector<8x32xf32>
    %352 = arith.addf %351, %350 : vector<8x32xf32>
    %353 = arith.divf %351, %352 : vector<8x32xf32>
    %354 = vector.extract_strided_slice %347 {offsets = [0, 32], sizes = [8, 32], strides = [1, 1]} : vector<8x128xf32> to vector<8x32xf32>
    %355 = arith.negf %354 : vector<8x32xf32>
    %356 = math.exp %355 : vector<8x32xf32>
    %cst_117 = arith.constant 1.000000e+00 : f32
    %357 = vector.broadcast %cst_117 : f32 to vector<8x32xf32>
    %358 = arith.addf %357, %356 : vector<8x32xf32>
    %359 = arith.divf %357, %358 : vector<8x32xf32>
    %360 = vector.extract_strided_slice %347 {offsets = [0, 64], sizes = [8, 32], strides = [1, 1]} : vector<8x128xf32> to vector<8x32xf32>
    %361 = math.tanh %360 : vector<8x32xf32>
    %362 = vector.extract_strided_slice %347 {offsets = [0, 96], sizes = [8, 32], strides = [1, 1]} : vector<8x128xf32> to vector<8x32xf32>
    %363 = arith.negf %362 : vector<8x32xf32>
    %364 = math.exp %363 : vector<8x32xf32>
    %cst_118 = arith.constant 1.000000e+00 : f32
    %365 = vector.broadcast %cst_118 : f32 to vector<8x32xf32>
    %366 = arith.addf %365, %364 : vector<8x32xf32>
    %367 = arith.divf %365, %366 : vector<8x32xf32>
    %368 = arith.mulf %359, %338 : vector<8x32xf32>
    %369 = arith.mulf %353, %361 : vector<8x32xf32>
    %370 = arith.addf %368, %369 : vector<8x32xf32>
    %371 = math.tanh %370 : vector<8x32xf32>
    %372 = arith.mulf %367, %371 : vector<8x32xf32>
    %373 = arith.maximumf %339, %372 : vector<8x32xf32>
    %c1_i32_119 = arith.constant 1 : i32
    %c8_i32_120 = arith.constant 8 : i32
    %374 = arith.muli %c1_i32_119, %c8_i32_120 : i32
    %375 = tpu.assume_multiple %374, 8 : i32
    %376 = arith.index_cast %375 : i32 to index
    %c0_121 = arith.constant 0 : index
    %377 = vector.load %arg15[%376, %c0_121] : memref<64x128xf32, #tpu.memory_space<vmem>>, vector<8x128xf32>
    %378 = arith.truncf %372 : vector<8x32xf32> to vector<8x32xbf16>
    %c0_122 = arith.constant 0 : index
    %c0_123 = arith.constant 0 : index
    %379 = vector.load %arg4[%c0_122, %c0_123] : memref<32x128xbf16, #tpu.memory_space<vmem>>, vector<32x128xbf16>
    %cst_124 = arith.constant dense<0.000000e+00> : vector<8x128xf32>
    %380 = tpu.matmul %378, %379, %cst_124 {dimension_numbers = #tpu.dot_dimension_numbers<[1], [0], [0], [1], [0, 0, 1, 1], [], []>} : vector<8x32xbf16>, vector<32x128xbf16>, vector<8x128xf32> -> vector<8x128xf32>
    %381 = arith.addf %377, %380 : vector<8x128xf32>
    %382 = vector.extract_strided_slice %381 {offsets = [0, 0], sizes = [8, 32], strides = [1, 1]} : vector<8x128xf32> to vector<8x32xf32>
    %383 = arith.negf %382 : vector<8x32xf32>
    %384 = math.exp %383 : vector<8x32xf32>
    %cst_125 = arith.constant 1.000000e+00 : f32
    %385 = vector.broadcast %cst_125 : f32 to vector<8x32xf32>
    %386 = arith.addf %385, %384 : vector<8x32xf32>
    %387 = arith.divf %385, %386 : vector<8x32xf32>
    %388 = vector.extract_strided_slice %381 {offsets = [0, 32], sizes = [8, 32], strides = [1, 1]} : vector<8x128xf32> to vector<8x32xf32>
    %389 = arith.negf %388 : vector<8x32xf32>
    %390 = math.exp %389 : vector<8x32xf32>
    %cst_126 = arith.constant 1.000000e+00 : f32
    %391 = vector.broadcast %cst_126 : f32 to vector<8x32xf32>
    %392 = arith.addf %391, %390 : vector<8x32xf32>
    %393 = arith.divf %391, %392 : vector<8x32xf32>
    %394 = vector.extract_strided_slice %381 {offsets = [0, 64], sizes = [8, 32], strides = [1, 1]} : vector<8x128xf32> to vector<8x32xf32>
    %395 = math.tanh %394 : vector<8x32xf32>
    %396 = vector.extract_strided_slice %381 {offsets = [0, 96], sizes = [8, 32], strides = [1, 1]} : vector<8x128xf32> to vector<8x32xf32>
    %397 = arith.negf %396 : vector<8x32xf32>
    %398 = math.exp %397 : vector<8x32xf32>
    %cst_127 = arith.constant 1.000000e+00 : f32
    %399 = vector.broadcast %cst_127 : f32 to vector<8x32xf32>
    %400 = arith.addf %399, %398 : vector<8x32xf32>
    %401 = arith.divf %399, %400 : vector<8x32xf32>
    %402 = arith.mulf %393, %370 : vector<8x32xf32>
    %403 = arith.mulf %387, %395 : vector<8x32xf32>
    %404 = arith.addf %402, %403 : vector<8x32xf32>
    %405 = math.tanh %404 : vector<8x32xf32>
    %406 = arith.mulf %401, %405 : vector<8x32xf32>
    %407 = arith.maximumf %373, %406 : vector<8x32xf32>
    %c2_i32_128 = arith.constant 2 : i32
    %c8_i32_129 = arith.constant 8 : i32
    %408 = arith.muli %c2_i32_128, %c8_i32_129 : i32
    %409 = tpu.assume_multiple %408, 8 : i32
    %410 = arith.index_cast %409 : i32 to index
    %c0_130 = arith.constant 0 : index
    %411 = vector.load %arg15[%410, %c0_130] : memref<64x128xf32, #tpu.memory_space<vmem>>, vector<8x128xf32>
    %412 = arith.truncf %406 : vector<8x32xf32> to vector<8x32xbf16>
    %c0_131 = arith.constant 0 : index
    %c0_132 = arith.constant 0 : index
    %413 = vector.load %arg4[%c0_131, %c0_132] : memref<32x128xbf16, #tpu.memory_space<vmem>>, vector<32x128xbf16>
    %cst_133 = arith.constant dense<0.000000e+00> : vector<8x128xf32>
    %414 = tpu.matmul %412, %413, %cst_133 {dimension_numbers = #tpu.dot_dimension_numbers<[1], [0], [0], [1], [0, 0, 1, 1], [], []>} : vector<8x32xbf16>, vector<32x128xbf16>, vector<8x128xf32> -> vector<8x128xf32>
    %415 = arith.addf %411, %414 : vector<8x128xf32>
    %416 = vector.extract_strided_slice %415 {offsets = [0, 0], sizes = [8, 32], strides = [1, 1]} : vector<8x128xf32> to vector<8x32xf32>
    %417 = arith.negf %416 : vector<8x32xf32>
    %418 = math.exp %417 : vector<8x32xf32>
    %cst_134 = arith.constant 1.000000e+00 : f32
    %419 = vector.broadcast %cst_134 : f32 to vector<8x32xf32>
    %420 = arith.addf %419, %418 : vector<8x32xf32>
    %421 = arith.divf %419, %420 : vector<8x32xf32>
    %422 = vector.extract_strided_slice %415 {offsets = [0, 32], sizes = [8, 32], strides = [1, 1]} : vector<8x128xf32> to vector<8x32xf32>
    %423 = arith.negf %422 : vector<8x32xf32>
    %424 = math.exp %423 : vector<8x32xf32>
    %cst_135 = arith.constant 1.000000e+00 : f32
    %425 = vector.broadcast %cst_135 : f32 to vector<8x32xf32>
    %426 = arith.addf %425, %424 : vector<8x32xf32>
    %427 = arith.divf %425, %426 : vector<8x32xf32>
    %428 = vector.extract_strided_slice %415 {offsets = [0, 64], sizes = [8, 32], strides = [1, 1]} : vector<8x128xf32> to vector<8x32xf32>
    %429 = math.tanh %428 : vector<8x32xf32>
    %430 = vector.extract_strided_slice %415 {offsets = [0, 96], sizes = [8, 32], strides = [1, 1]} : vector<8x128xf32> to vector<8x32xf32>
    %431 = arith.negf %430 : vector<8x32xf32>
    %432 = math.exp %431 : vector<8x32xf32>
    %cst_136 = arith.constant 1.000000e+00 : f32
    %433 = vector.broadcast %cst_136 : f32 to vector<8x32xf32>
    %434 = arith.addf %433, %432 : vector<8x32xf32>
    %435 = arith.divf %433, %434 : vector<8x32xf32>
    %436 = arith.mulf %427, %404 : vector<8x32xf32>
    %437 = arith.mulf %421, %429 : vector<8x32xf32>
    %438 = arith.addf %436, %437 : vector<8x32xf32>
    %439 = math.tanh %438 : vector<8x32xf32>
    %440 = arith.mulf %435, %439 : vector<8x32xf32>
    %441 = arith.maximumf %407, %440 : vector<8x32xf32>
    %c3_i32_137 = arith.constant 3 : i32
    %c8_i32_138 = arith.constant 8 : i32
    %442 = arith.muli %c3_i32_137, %c8_i32_138 : i32
    %443 = tpu.assume_multiple %442, 8 : i32
    %444 = arith.index_cast %443 : i32 to index
    %c0_139 = arith.constant 0 : index
    %445 = vector.load %arg15[%444, %c0_139] : memref<64x128xf32, #tpu.memory_space<vmem>>, vector<8x128xf32>
    %446 = arith.truncf %440 : vector<8x32xf32> to vector<8x32xbf16>
    %c0_140 = arith.constant 0 : index
    %c0_141 = arith.constant 0 : index
    %447 = vector.load %arg4[%c0_140, %c0_141] : memref<32x128xbf16, #tpu.memory_space<vmem>>, vector<32x128xbf16>
    %cst_142 = arith.constant dense<0.000000e+00> : vector<8x128xf32>
    %448 = tpu.matmul %446, %447, %cst_142 {dimension_numbers = #tpu.dot_dimension_numbers<[1], [0], [0], [1], [0, 0, 1, 1], [], []>} : vector<8x32xbf16>, vector<32x128xbf16>, vector<8x128xf32> -> vector<8x128xf32>
    %449 = arith.addf %445, %448 : vector<8x128xf32>
    %450 = vector.extract_strided_slice %449 {offsets = [0, 0], sizes = [8, 32], strides = [1, 1]} : vector<8x128xf32> to vector<8x32xf32>
    %451 = arith.negf %450 : vector<8x32xf32>
    %452 = math.exp %451 : vector<8x32xf32>
    %cst_143 = arith.constant 1.000000e+00 : f32
    %453 = vector.broadcast %cst_143 : f32 to vector<8x32xf32>
    %454 = arith.addf %453, %452 : vector<8x32xf32>
    %455 = arith.divf %453, %454 : vector<8x32xf32>
    %456 = vector.extract_strided_slice %449 {offsets = [0, 32], sizes = [8, 32], strides = [1, 1]} : vector<8x128xf32> to vector<8x32xf32>
    %457 = arith.negf %456 : vector<8x32xf32>
    %458 = math.exp %457 : vector<8x32xf32>
    %cst_144 = arith.constant 1.000000e+00 : f32
    %459 = vector.broadcast %cst_144 : f32 to vector<8x32xf32>
    %460 = arith.addf %459, %458 : vector<8x32xf32>
    %461 = arith.divf %459, %460 : vector<8x32xf32>
    %462 = vector.extract_strided_slice %449 {offsets = [0, 64], sizes = [8, 32], strides = [1, 1]} : vector<8x128xf32> to vector<8x32xf32>
    %463 = math.tanh %462 : vector<8x32xf32>
    %464 = vector.extract_strided_slice %449 {offsets = [0, 96], sizes = [8, 32], strides = [1, 1]} : vector<8x128xf32> to vector<8x32xf32>
    %465 = arith.negf %464 : vector<8x32xf32>
    %466 = math.exp %465 : vector<8x32xf32>
    %cst_145 = arith.constant 1.000000e+00 : f32
    %467 = vector.broadcast %cst_145 : f32 to vector<8x32xf32>
    %468 = arith.addf %467, %466 : vector<8x32xf32>
    %469 = arith.divf %467, %468 : vector<8x32xf32>
    %470 = arith.mulf %461, %438 : vector<8x32xf32>
    %471 = arith.mulf %455, %463 : vector<8x32xf32>
    %472 = arith.addf %470, %471 : vector<8x32xf32>
    %473 = math.tanh %472 : vector<8x32xf32>
    %474 = arith.mulf %469, %473 : vector<8x32xf32>
    %475 = arith.maximumf %441, %474 : vector<8x32xf32>
    %c4_i32_146 = arith.constant 4 : i32
    %c8_i32_147 = arith.constant 8 : i32
    %476 = arith.muli %c4_i32_146, %c8_i32_147 : i32
    %477 = tpu.assume_multiple %476, 8 : i32
    %478 = arith.index_cast %477 : i32 to index
    %c0_148 = arith.constant 0 : index
    %479 = vector.load %arg15[%478, %c0_148] : memref<64x128xf32, #tpu.memory_space<vmem>>, vector<8x128xf32>
    %480 = arith.truncf %474 : vector<8x32xf32> to vector<8x32xbf16>
    %c0_149 = arith.constant 0 : index
    %c0_150 = arith.constant 0 : index
    %481 = vector.load %arg4[%c0_149, %c0_150] : memref<32x128xbf16, #tpu.memory_space<vmem>>, vector<32x128xbf16>
    %cst_151 = arith.constant dense<0.000000e+00> : vector<8x128xf32>
    %482 = tpu.matmul %480, %481, %cst_151 {dimension_numbers = #tpu.dot_dimension_numbers<[1], [0], [0], [1], [0, 0, 1, 1], [], []>} : vector<8x32xbf16>, vector<32x128xbf16>, vector<8x128xf32> -> vector<8x128xf32>
    %483 = arith.addf %479, %482 : vector<8x128xf32>
    %484 = vector.extract_strided_slice %483 {offsets = [0, 0], sizes = [8, 32], strides = [1, 1]} : vector<8x128xf32> to vector<8x32xf32>
    %485 = arith.negf %484 : vector<8x32xf32>
    %486 = math.exp %485 : vector<8x32xf32>
    %cst_152 = arith.constant 1.000000e+00 : f32
    %487 = vector.broadcast %cst_152 : f32 to vector<8x32xf32>
    %488 = arith.addf %487, %486 : vector<8x32xf32>
    %489 = arith.divf %487, %488 : vector<8x32xf32>
    %490 = vector.extract_strided_slice %483 {offsets = [0, 32], sizes = [8, 32], strides = [1, 1]} : vector<8x128xf32> to vector<8x32xf32>
    %491 = arith.negf %490 : vector<8x32xf32>
    %492 = math.exp %491 : vector<8x32xf32>
    %cst_153 = arith.constant 1.000000e+00 : f32
    %493 = vector.broadcast %cst_153 : f32 to vector<8x32xf32>
    %494 = arith.addf %493, %492 : vector<8x32xf32>
    %495 = arith.divf %493, %494 : vector<8x32xf32>
    %496 = vector.extract_strided_slice %483 {offsets = [0, 64], sizes = [8, 32], strides = [1, 1]} : vector<8x128xf32> to vector<8x32xf32>
    %497 = math.tanh %496 : vector<8x32xf32>
    %498 = vector.extract_strided_slice %483 {offsets = [0, 96], sizes = [8, 32], strides = [1, 1]} : vector<8x128xf32> to vector<8x32xf32>
    %499 = arith.negf %498 : vector<8x32xf32>
    %500 = math.exp %499 : vector<8x32xf32>
    %cst_154 = arith.constant 1.000000e+00 : f32
    %501 = vector.broadcast %cst_154 : f32 to vector<8x32xf32>
    %502 = arith.addf %501, %500 : vector<8x32xf32>
    %503 = arith.divf %501, %502 : vector<8x32xf32>
    %504 = arith.mulf %495, %472 : vector<8x32xf32>
    %505 = arith.mulf %489, %497 : vector<8x32xf32>
    %506 = arith.addf %504, %505 : vector<8x32xf32>
    %507 = math.tanh %506 : vector<8x32xf32>
    %508 = arith.mulf %503, %507 : vector<8x32xf32>
    %509 = arith.maximumf %475, %508 : vector<8x32xf32>
    %c5_i32_155 = arith.constant 5 : i32
    %c8_i32_156 = arith.constant 8 : i32
    %510 = arith.muli %c5_i32_155, %c8_i32_156 : i32
    %511 = tpu.assume_multiple %510, 8 : i32
    %512 = arith.index_cast %511 : i32 to index
    %c0_157 = arith.constant 0 : index
    %513 = vector.load %arg15[%512, %c0_157] : memref<64x128xf32, #tpu.memory_space<vmem>>, vector<8x128xf32>
    %514 = arith.truncf %508 : vector<8x32xf32> to vector<8x32xbf16>
    %c0_158 = arith.constant 0 : index
    %c0_159 = arith.constant 0 : index
    %515 = vector.load %arg4[%c0_158, %c0_159] : memref<32x128xbf16, #tpu.memory_space<vmem>>, vector<32x128xbf16>
    %cst_160 = arith.constant dense<0.000000e+00> : vector<8x128xf32>
    %516 = tpu.matmul %514, %515, %cst_160 {dimension_numbers = #tpu.dot_dimension_numbers<[1], [0], [0], [1], [0, 0, 1, 1], [], []>} : vector<8x32xbf16>, vector<32x128xbf16>, vector<8x128xf32> -> vector<8x128xf32>
    %517 = arith.addf %513, %516 : vector<8x128xf32>
    %518 = vector.extract_strided_slice %517 {offsets = [0, 0], sizes = [8, 32], strides = [1, 1]} : vector<8x128xf32> to vector<8x32xf32>
    %519 = arith.negf %518 : vector<8x32xf32>
    %520 = math.exp %519 : vector<8x32xf32>
    %cst_161 = arith.constant 1.000000e+00 : f32
    %521 = vector.broadcast %cst_161 : f32 to vector<8x32xf32>
    %522 = arith.addf %521, %520 : vector<8x32xf32>
    %523 = arith.divf %521, %522 : vector<8x32xf32>
    %524 = vector.extract_strided_slice %517 {offsets = [0, 32], sizes = [8, 32], strides = [1, 1]} : vector<8x128xf32> to vector<8x32xf32>
    %525 = arith.negf %524 : vector<8x32xf32>
    %526 = math.exp %525 : vector<8x32xf32>
    %cst_162 = arith.constant 1.000000e+00 : f32
    %527 = vector.broadcast %cst_162 : f32 to vector<8x32xf32>
    %528 = arith.addf %527, %526 : vector<8x32xf32>
    %529 = arith.divf %527, %528 : vector<8x32xf32>
    %530 = vector.extract_strided_slice %517 {offsets = [0, 64], sizes = [8, 32], strides = [1, 1]} : vector<8x128xf32> to vector<8x32xf32>
    %531 = math.tanh %530 : vector<8x32xf32>
    %532 = vector.extract_strided_slice %517 {offsets = [0, 96], sizes = [8, 32], strides = [1, 1]} : vector<8x128xf32> to vector<8x32xf32>
    %533 = arith.negf %532 : vector<8x32xf32>
    %534 = math.exp %533 : vector<8x32xf32>
    %cst_163 = arith.constant 1.000000e+00 : f32
    %535 = vector.broadcast %cst_163 : f32 to vector<8x32xf32>
    %536 = arith.addf %535, %534 : vector<8x32xf32>
    %537 = arith.divf %535, %536 : vector<8x32xf32>
    %538 = arith.mulf %529, %506 : vector<8x32xf32>
    %539 = arith.mulf %523, %531 : vector<8x32xf32>
    %540 = arith.addf %538, %539 : vector<8x32xf32>
    %541 = math.tanh %540 : vector<8x32xf32>
    %542 = arith.mulf %537, %541 : vector<8x32xf32>
    %543 = arith.maximumf %509, %542 : vector<8x32xf32>
    %c6_i32_164 = arith.constant 6 : i32
    %c8_i32_165 = arith.constant 8 : i32
    %544 = arith.muli %c6_i32_164, %c8_i32_165 : i32
    %545 = tpu.assume_multiple %544, 8 : i32
    %546 = arith.index_cast %545 : i32 to index
    %c0_166 = arith.constant 0 : index
    %547 = vector.load %arg15[%546, %c0_166] : memref<64x128xf32, #tpu.memory_space<vmem>>, vector<8x128xf32>
    %548 = arith.truncf %542 : vector<8x32xf32> to vector<8x32xbf16>
    %c0_167 = arith.constant 0 : index
    %c0_168 = arith.constant 0 : index
    %549 = vector.load %arg4[%c0_167, %c0_168] : memref<32x128xbf16, #tpu.memory_space<vmem>>, vector<32x128xbf16>
    %cst_169 = arith.constant dense<0.000000e+00> : vector<8x128xf32>
    %550 = tpu.matmul %548, %549, %cst_169 {dimension_numbers = #tpu.dot_dimension_numbers<[1], [0], [0], [1], [0, 0, 1, 1], [], []>} : vector<8x32xbf16>, vector<32x128xbf16>, vector<8x128xf32> -> vector<8x128xf32>
    %551 = arith.addf %547, %550 : vector<8x128xf32>
    %552 = vector.extract_strided_slice %551 {offsets = [0, 0], sizes = [8, 32], strides = [1, 1]} : vector<8x128xf32> to vector<8x32xf32>
    %553 = arith.negf %552 : vector<8x32xf32>
    %554 = math.exp %553 : vector<8x32xf32>
    %cst_170 = arith.constant 1.000000e+00 : f32
    %555 = vector.broadcast %cst_170 : f32 to vector<8x32xf32>
    %556 = arith.addf %555, %554 : vector<8x32xf32>
    %557 = arith.divf %555, %556 : vector<8x32xf32>
    %558 = vector.extract_strided_slice %551 {offsets = [0, 32], sizes = [8, 32], strides = [1, 1]} : vector<8x128xf32> to vector<8x32xf32>
    %559 = arith.negf %558 : vector<8x32xf32>
    %560 = math.exp %559 : vector<8x32xf32>
    %cst_171 = arith.constant 1.000000e+00 : f32
    %561 = vector.broadcast %cst_171 : f32 to vector<8x32xf32>
    %562 = arith.addf %561, %560 : vector<8x32xf32>
    %563 = arith.divf %561, %562 : vector<8x32xf32>
    %564 = vector.extract_strided_slice %551 {offsets = [0, 64], sizes = [8, 32], strides = [1, 1]} : vector<8x128xf32> to vector<8x32xf32>
    %565 = math.tanh %564 : vector<8x32xf32>
    %566 = vector.extract_strided_slice %551 {offsets = [0, 96], sizes = [8, 32], strides = [1, 1]} : vector<8x128xf32> to vector<8x32xf32>
    %567 = arith.negf %566 : vector<8x32xf32>
    %568 = math.exp %567 : vector<8x32xf32>
    %cst_172 = arith.constant 1.000000e+00 : f32
    %569 = vector.broadcast %cst_172 : f32 to vector<8x32xf32>
    %570 = arith.addf %569, %568 : vector<8x32xf32>
    %571 = arith.divf %569, %570 : vector<8x32xf32>
    %572 = arith.mulf %563, %540 : vector<8x32xf32>
    %573 = arith.mulf %557, %565 : vector<8x32xf32>
    %574 = arith.addf %572, %573 : vector<8x32xf32>
    %575 = math.tanh %574 : vector<8x32xf32>
    %576 = arith.mulf %571, %575 : vector<8x32xf32>
    %577 = arith.maximumf %543, %576 : vector<8x32xf32>
    %c7_i32_173 = arith.constant 7 : i32
    %c8_i32_174 = arith.constant 8 : i32
    %578 = arith.muli %c7_i32_173, %c8_i32_174 : i32
    %579 = tpu.assume_multiple %578, 8 : i32
    %580 = arith.index_cast %579 : i32 to index
    %c0_175 = arith.constant 0 : index
    %581 = vector.load %arg15[%580, %c0_175] : memref<64x128xf32, #tpu.memory_space<vmem>>, vector<8x128xf32>
    %582 = arith.truncf %576 : vector<8x32xf32> to vector<8x32xbf16>
    %c0_176 = arith.constant 0 : index
    %c0_177 = arith.constant 0 : index
    %583 = vector.load %arg4[%c0_176, %c0_177] : memref<32x128xbf16, #tpu.memory_space<vmem>>, vector<32x128xbf16>
    %cst_178 = arith.constant dense<0.000000e+00> : vector<8x128xf32>
    %584 = tpu.matmul %582, %583, %cst_178 {dimension_numbers = #tpu.dot_dimension_numbers<[1], [0], [0], [1], [0, 0, 1, 1], [], []>} : vector<8x32xbf16>, vector<32x128xbf16>, vector<8x128xf32> -> vector<8x128xf32>
    %585 = arith.addf %581, %584 : vector<8x128xf32>
    %586 = vector.extract_strided_slice %585 {offsets = [0, 0], sizes = [8, 32], strides = [1, 1]} : vector<8x128xf32> to vector<8x32xf32>
    %587 = arith.negf %586 : vector<8x32xf32>
    %588 = math.exp %587 : vector<8x32xf32>
    %cst_179 = arith.constant 1.000000e+00 : f32
    %589 = vector.broadcast %cst_179 : f32 to vector<8x32xf32>
    %590 = arith.addf %589, %588 : vector<8x32xf32>
    %591 = arith.divf %589, %590 : vector<8x32xf32>
    %592 = vector.extract_strided_slice %585 {offsets = [0, 32], sizes = [8, 32], strides = [1, 1]} : vector<8x128xf32> to vector<8x32xf32>
    %593 = arith.negf %592 : vector<8x32xf32>
    %594 = math.exp %593 : vector<8x32xf32>
    %cst_180 = arith.constant 1.000000e+00 : f32
    %595 = vector.broadcast %cst_180 : f32 to vector<8x32xf32>
    %596 = arith.addf %595, %594 : vector<8x32xf32>
    %597 = arith.divf %595, %596 : vector<8x32xf32>
    %598 = vector.extract_strided_slice %585 {offsets = [0, 64], sizes = [8, 32], strides = [1, 1]} : vector<8x128xf32> to vector<8x32xf32>
    %599 = math.tanh %598 : vector<8x32xf32>
    %600 = vector.extract_strided_slice %585 {offsets = [0, 96], sizes = [8, 32], strides = [1, 1]} : vector<8x128xf32> to vector<8x32xf32>
    %601 = arith.negf %600 : vector<8x32xf32>
    %602 = math.exp %601 : vector<8x32xf32>
    %cst_181 = arith.constant 1.000000e+00 : f32
    %603 = vector.broadcast %cst_181 : f32 to vector<8x32xf32>
    %604 = arith.addf %603, %602 : vector<8x32xf32>
    %605 = arith.divf %603, %604 : vector<8x32xf32>
    %606 = arith.mulf %597, %574 : vector<8x32xf32>
    %607 = arith.mulf %591, %599 : vector<8x32xf32>
    %608 = arith.addf %606, %607 : vector<8x32xf32>
    %609 = math.tanh %608 : vector<8x32xf32>
    %610 = arith.mulf %605, %609 : vector<8x32xf32>
    %611 = arith.maximumf %577, %610 : vector<8x32xf32>
    %c8_i32_182 = arith.constant 8 : i32
    %c0_183 = arith.constant 0 : index
    %c0_184 = arith.constant 0 : index
    %612 = vector.load %arg13[%c0_183, %c0_184] : memref<8x32xf32, #tpu.memory_space<vmem>>, vector<8x32xf32>
    tpu.vector_store %arg13[%c0_183, %c0_184], %611 {strides = array<i32>} : memref<8x32xf32, #tpu.memory_space<vmem>>, vector<8x32xf32>,
    %c1_185 = arith.constant 1 : index
    %c0_186 = arith.constant 0 : index
    %c0_187 = arith.constant 0 : index
    %613 = vector.load %arg11[%c1_185, %c0_186, %c0_187] : memref<2x8x32xf32, #tpu.memory_space<vmem>>, vector<1x8x32xf32>
    %614 = vector.shape_cast %613 : vector<1x8x32xf32> to vector<8x32xf32>
    %615 = vector.shape_cast %610 : vector<8x32xf32> to vector<1x8x32xf32>
    tpu.vector_store %arg11[%c1_185, %c0_186, %c0_187], %615 {strides = array<i32>} : memref<2x8x32xf32, #tpu.memory_space<vmem>>, vector<1x8x32xf32>,
    %c1_188 = arith.constant 1 : index
    %c0_189 = arith.constant 0 : index
    %c0_190 = arith.constant 0 : index
    %616 = vector.load %arg12[%c1_188, %c0_189, %c0_190] : memref<2x8x32xf32, #tpu.memory_space<vmem>>, vector<1x8x32xf32>
    %617 = vector.shape_cast %616 : vector<1x8x32xf32> to vector<8x32xf32>
    %618 = vector.shape_cast %608 : vector<8x32xf32> to vector<1x8x32xf32>
    tpu.vector_store %arg12[%c1_188, %c0_189, %c0_190], %618 {strides = array<i32>} : memref<2x8x32xf32, #tpu.memory_space<vmem>>, vector<1x8x32xf32>,
    %c0_i32_191 = arith.constant 0 : i32
    %619 = arith.cmpi eq, %arg1, %c0_i32_191 : i32
    %620 = arith.extui %619 : i1 to i32
    %c0_i32_192 = arith.constant 0 : i32
    %621 = arith.cmpi ne, %620, %c0_i32_192 : i32
    scf.if %621 {
      %c0_193 = arith.constant 0 : index
      %c0_194 = arith.constant 0 : index
      %622 = vector.load %arg13[%c0_193, %c0_194] : memref<8x32xf32, #tpu.memory_space<vmem>>, vector<8x32xf32>
      %c0_195 = arith.constant 0 : index
      %c0_196 = arith.constant 0 : index
      %623 = vector.load %arg8[%c0_195, %c0_196] : memref<32x8xf32, #tpu.memory_space<vmem>>, vector<32x8xf32>
      %cst_197 = arith.constant dense<0.000000e+00> : vector<8x8xf32>
      %624 = tpu.matmul %622, %623, %cst_197 {dimension_numbers = #tpu.dot_dimension_numbers<[1], [0], [0], [1], [0, 0, 1, 1], [], []>} : vector<8x32xf32>, vector<32x8xf32>, vector<8x8xf32> -> vector<8x8xf32>
      %c0_198 = arith.constant 0 : index
      %c0_199 = arith.constant 0 : index
      %625 = vector.load %arg9[%c0_198, %c0_199] : memref<1x8xf32, #tpu.memory_space<vmem>>, vector<1x8xf32>
      %626 = vector.broadcast %625 : vector<1x8xf32> to vector<8x8xf32>
      %627 = arith.addf %624, %626 : vector<8x8xf32>
      %c0_200 = arith.constant 0 : index
      %c0_201 = arith.constant 0 : index
      %628 = vector.load %arg10[%c0_200, %c0_201] : memref<8x8xf32, #tpu.memory_space<vmem>>, vector<8x8xf32>
      tpu.vector_store %arg10[%c0_200, %c0_201], %627 {strides = array<i32>} : memref<8x8xf32, #tpu.memory_space<vmem>>, vector<8x8xf32>,
    } else {
    }
    return
  }
  func.func @transform_0(%arg0: i32, %arg1: i32) -> (i32, i32, i32) {
    %c0_i32 = arith.constant 0 : i32
    %c0_i32_0 = arith.constant 0 : i32
    return %arg1, %arg0, %c0_i32 : i32, i32, i32
  }
  func.func @transform_1(%arg0: i32, %arg1: i32) -> (i32, i32) {
    %c0_i32 = arith.constant 0 : i32
    %c0_i32_0 = arith.constant 0 : i32
    %c0_i32_1 = arith.constant 0 : i32
    return %c0_i32, %c0_i32_0 : i32, i32
  }
  func.func @transform_2(%arg0: i32, %arg1: i32) -> (i32, i32) {
    %c0_i32 = arith.constant 0 : i32
    %c0_i32_0 = arith.constant 0 : i32
    %c0_i32_1 = arith.constant 0 : i32
    return %c0_i32, %c0_i32_0 : i32, i32
  }
  func.func @transform_3(%arg0: i32, %arg1: i32) -> (i32, i32) {
    %c0_i32 = arith.constant 0 : i32
    %c0_i32_0 = arith.constant 0 : i32
    %c0_i32_1 = arith.constant 0 : i32
    return %c0_i32, %c0_i32_0 : i32, i32
  }
  func.func @transform_4(%arg0: i32, %arg1: i32) -> (i32, i32) {
    %c0_i32 = arith.constant 0 : i32
    %c0_i32_0 = arith.constant 0 : i32
    %c0_i32_1 = arith.constant 0 : i32
    return %c0_i32, %c0_i32_0 : i32, i32
  }
  func.func @transform_5(%arg0: i32, %arg1: i32) -> (i32, i32) {
    %c0_i32 = arith.constant 0 : i32
    %c0_i32_0 = arith.constant 0 : i32
    %c0_i32_1 = arith.constant 0 : i32
    return %c0_i32, %c0_i32_0 : i32, i32
  }
  func.func @transform_6(%arg0: i32, %arg1: i32) -> (i32, i32) {
    %c0_i32 = arith.constant 0 : i32
    %c0_i32_0 = arith.constant 0 : i32
    %c0_i32_1 = arith.constant 0 : i32
    return %c0_i32, %c0_i32_0 : i32, i32
  }
  func.func @transform_7(%arg0: i32, %arg1: i32) -> (i32, i32) {
    %c0_i32 = arith.constant 0 : i32
    %c0_i32_0 = arith.constant 0 : i32
    %c0_i32_1 = arith.constant 0 : i32
    return %c0_i32, %c0_i32_0 : i32, i32
  }
  func.func @transform_8(%arg0: i32, %arg1: i32) -> (i32, i32) {
    %c0_i32 = arith.constant 0 : i32
    %c0_i32_0 = arith.constant 0 : i32
    return %arg0, %c0_i32 : i32, i32
  }
}

</mosaic_0001>

<llo_original>
// kernel: tpu_custom_call.1
$region0: #{tpu_custom_call.1}
  #allocation0 [shape = 'u32[]', space=smem, size = 0x4, offset = 0x4, fixed_abs, tag = 'smem constant byte address 0x4 - core index']
  #allocation1 [shape = 'u32[72,128]{1,0:T(1,128)}', space=vmem, size = 0x9000, scoped, tag = 'internal scratch']
  #allocation2 [shape = 'f32[2,8,32]{2,1,0:T(8,128)}', space=vmem, size = 0x2000, scoped, tag = 'scratch operand']
  #allocation3 [shape = 'f32[2,8,32]{2,1,0:T(8,128)}', space=vmem, size = 0x2000, scoped, tag = 'scratch operand']
  #allocation4 [shape = 'f32[8,32]{1,0:T(8,128)}', space=vmem, size = 0x1000, scoped, tag = 'scratch operand']
  #allocation5 [shape = 'bf16[64,32]{1,0:T(8,128)(2,1)}', space=vmem, size = 0x4000, scoped, tag = 'scratch operand']
  #allocation6 [shape = 'f32[64,128]{1,0:T(8,128)}', space=vmem, size = 0x8000, scoped, tag = 'scratch operand']
  %s0 = inlined_call_operand.vmem [shape: bf16[8,8,128], index: 0, kind: input, shape index: {}]
  %s1 = inlined_call_operand.hbm [shape: bf16[32,128], index: 1, kind: input, shape index: {}]
  %s2 = inlined_call_operand.hbm [shape: bf16[32,128], index: 2, kind: input, shape index: {}]
  %s3 = inlined_call_operand.hbm [shape: bf16[32,128], index: 3, kind: input, shape index: {}]
  %s4 = inlined_call_operand.vmem [shape: f32[1,128], index: 4, kind: input, shape index: {}]
  %s5 = inlined_call_operand.vmem [shape: f32[1,128], index: 5, kind: input, shape index: {}]
  %s6 = inlined_call_operand.vmem [shape: f32[32,8], index: 6, kind: input, shape index: {}]
  %s7 = inlined_call_operand.vmem [shape: f32[1,8], index: 7, kind: input, shape index: {}]
  %s8 = inlined_call_operand.hbm [shape: f32[8,8], index: 8, kind: output, shape index: {}]
  %s9 = sld [smem:[#allocation0]]
  $region62: #{tpu_custom_call.1} parent=0
    _
  %s11 = ssub.s32 1, %s9
  %s12 = scalar_select 0, %s11, %s9
  $region1: #{tpu_custom_call.1} parent=0
    #allocation7 [shape = 'u8[8192]{0}', space=vmem, size = 0x2000, scoped, tag = 'input window, operand 1, single buffered']
    #allocation8 [shape = 's32[1]{0}', space=sflag, size = 0x4, scoped, tag = 'scoped memory for tpu_custom_call.1']
    #allocation9 [shape = 's32[1]{0}', space=sflag, size = 0x4, scoped, tag = 'scoped memory for tpu_custom_call.1']
    #allocation10 [shape = 'u8[8192]{0}', space=vmem, size = 0x2000, scoped, tag = 'input window, operand 2, single buffered']
    #allocation11 [shape = 's32[1]{0}', space=sflag, size = 0x4, scoped, tag = 'scoped memory for tpu_custom_call.1']
    #allocation12 [shape = 'u8[8192]{0}', space=vmem, size = 0x2000, scoped, tag = 'input window, operand 3, single buffered']
    #allocation13 [shape = 'u8[4096]{0}', space=vmem, size = 0x1000, scoped, tag = 'output window, operand 0, single buffered']
    %13 = vsyncpa [#allocation8], 0
    %14 = vsyncpa [#allocation11], 0
    %15 = vsyncpa [#allocation9], 0
    // Predicated region
    $region2: #{tpu_custom_call.1} parent=1 // pred_check
      _
    $region3: #{tpu_custom_call.1} parent=1 // pred_check_branch
      %17 = sbr.rel (0) target = $region5
    $region4: #{tpu_custom_call.1} parent=1 // pred_region
      _
    $region5: #{tpu_custom_call.1} parent=1 // pred_fallthru
      _
    // Predicated region
    $region6: #{tpu_custom_call.1} parent=1 // pred_check
      _
    $region7: #{tpu_custom_call.1} parent=1 // pred_check_branch
      %19 = sbr.rel (0) target = $region9
    $region8: #{tpu_custom_call.1} parent=1 // pred_region
      %21 = vsyncadd [#allocation8], 0
      %s22 = sshll.u32 %s1, 4
      %s23 = int_to_ptr.hbm [resolvable:$true] %s22
      %s24 = sshll.u32 [#allocation7], 4
      %s25 = int_to_ptr.vmem [resolvable:$true] %s24
      %30 = dma.hbm_to_vmem [thread:$0]  %s23, 256, %s25, [#allocation8], 64, 64, 4
    $region9: #{tpu_custom_call.1} parent=1 // pred_fallthru
      _
    // Predicated region
    $region10: #{tpu_custom_call.1} parent=1 // pred_check
      _
    $region11: #{tpu_custom_call.1} parent=1 // pred_check_branch
      %32 = sbr.rel (0) target = $region13
    $region12: #{tpu_custom_call.1} parent=1 // pred_region
      %34 = vsyncadd [#allocation11], 0
      %s35 = sshll.u32 %s2, 4
      %s36 = int_to_ptr.hbm [resolvable:$true] %s35
      %s37 = sshll.u32 [#allocation10], 4
      %s38 = int_to_ptr.vmem [resolvable:$true] %s37
      %43 = dma.hbm_to_vmem [thread:$0]  %s36, 256, %s38, [#allocation11], 64, 64, 4
    $region13: #{tpu_custom_call.1} parent=1 // pred_fallthru
      _
    // Predicated region
    $region14: #{tpu_custom_call.1} parent=1 // pred_check
      _
    $region15: #{tpu_custom_call.1} parent=1 // pred_check_branch
      %45 = sbr.rel (0) target = $region17
    $region16: #{tpu_custom_call.1} parent=1 // pred_region
      %47 = vsyncadd [#allocation11], 0
      %s48 = sshll.u32 %s3, 4
      %s49 = int_to_ptr.hbm [resolvable:$true] %s48
      %s50 = sshll.u32 [#allocation12], 4
      %s51 = int_to_ptr.vmem [resolvable:$true] %s50
      %56 = dma.hbm_to_vmem [thread:$0]  %s49, 256, %s51, [#allocation11], 64, 64, 4
    $region17: #{tpu_custom_call.1} parent=1 // pred_fallthru
      _
    // Predicated region
    $region18: #{tpu_custom_call.1} parent=1 // pred_check
      _
    $region19: #{tpu_custom_call.1} parent=1 // pred_check_branch
      %58 = sbr.rel (0) target = $region21
    $region20: #{tpu_custom_call.1} parent=1 // pred_region
      _
    $region21: #{tpu_custom_call.1} parent=1 // pred_fallthru
      _
    // Predicated region
    $region22: #{tpu_custom_call.1} parent=1 // pred_check
      _
    $region23: #{tpu_custom_call.1} parent=1 // pred_check_branch
      %60 = sbr.rel (0) target = $region25
    $region24: #{tpu_custom_call.1} parent=1 // pred_region
      _
    $region25: #{tpu_custom_call.1} parent=1 // pred_fallthru
      _
    // Predicated region
    $region26: #{tpu_custom_call.1} parent=1 // pred_check
      _
    $region27: #{tpu_custom_call.1} parent=1 // pred_check_branch
      %62 = sbr.rel (0) target = $region29
    $region28: #{tpu_custom_call.1} parent=1 // pred_region
      _
    $region29: #{tpu_custom_call.1} parent=1 // pred_fallthru
      _
    // Predicated region
    $region30: #{tpu_custom_call.1} parent=1 // pred_check
      _
    $region31: #{tpu_custom_call.1} parent=1 // pred_check_branch
      %64 = sbr.rel (0) target = $region33
    $region32: #{tpu_custom_call.1} parent=1 // pred_region
      _
    $region33: #{tpu_custom_call.1} parent=1 // pred_fallthru
      _
    // Predicated region
    $region34: #{tpu_custom_call.1} parent=1 // pred_check
      _
    $region35: #{tpu_custom_call.1} parent=1 // pred_check_branch
      %66 = sbr.rel (0) target = $region37
    $region36: #{tpu_custom_call.1} parent=1 // pred_region
      %68 = dma.done [#allocation8], 256
    $region37: #{tpu_custom_call.1} parent=1 // pred_fallthru
      _
    // Predicated region
    $region38: #{tpu_custom_call.1} parent=1 // pred_check
      _
    $region39: #{tpu_custom_call.1} parent=1 // pred_check_branch
      %70 = sbr.rel (0) target = $region41
    $region40: #{tpu_custom_call.1} parent=1 // pred_region
      %72 = dma.done [#allocation11], 256
    $region41: #{tpu_custom_call.1} parent=1 // pred_fallthru
      _
    // Predicated region
    $region42: #{tpu_custom_call.1} parent=1 // pred_check
      _
    $region43: #{tpu_custom_call.1} parent=1 // pred_check_branch
      %74 = sbr.rel (0) target = $region45
    $region44: #{tpu_custom_call.1} parent=1 // pred_region
      %76 = dma.done [#allocation11], 256
    $region45: #{tpu_custom_call.1} parent=1 // pred_fallthru
      _
    %p78 = scmp.eq.s32.totalorder 0, 0
    // Predicated region
    $region46: #{tpu_custom_call.1} parent=1 // pred_check
      %p79 = pneg %p78
    $region47: #{tpu_custom_call.1} parent=1 // pred_check_branch
      %81 = sbr.rel (%p79) target = $region49
    $region48: #{tpu_custom_call.1} parent=1 // pred_region
      %vm82 = vcmask 261120
      %83 = vst.msk [vmem:[#allocation2] sm:$0xff] %vm82, 0.0
      %84 = vst.msk [vmem:[#allocation2 + $0x8] sm:$0xff] %vm82, 0.0
      %85 = vst.msk [vmem:[#allocation3] sm:$0xff] %vm82, 0.0
      %86 = vst.msk [vmem:[#allocation3 + $0x8] sm:$0xff] %vm82, 0.0
      %87 = vst.msk [vmem:[#allocation4] sm:$0xff] %vm82, -inf
    $region49: #{tpu_custom_call.1} parent=1 // pred_fallthru
      _
    %v88 = vld [vmem:[#allocation2] sm:$0xff]
    %v89 = vld [vmem:[#allocation3] sm:$0xff]
    %v90 = vld [vmem:[%s4] sm:$0x1]
    %v92 = vperm.slane %v90, 0
    %v94 = vld [vmem:[%s0] sm:$0xf]
    %v95 = vunpack.c.l.bf16 %v94
    %v96 = vadd.f32 %v95, %v92
    %v97 = vpack.c.bf16 %v88, %v88
    %v98 = vld [vmem:[#allocation7] sm:$0xf]
    %v99 = vld [vmem:[#allocation7 + $0x4] sm:$0xf]
    %v100 = vld [vmem:[#allocation7 + $0x8] sm:$0xf]
    %v101 = vld [vmem:[#allocation7 + $0xc] sm:$0xf]
    %v106 = vunpack.c.l.b16 %v98
    %v107 = vunpack.c.l.b16 %v99
    %v108 = vunpack.c.l.b16 %v100
    %v109 = vunpack.c.l.b16 %v101
    %v110 = vpack.c.b16 %v107, %v106
    %v111 = vpack.c.b16 %v109, %v108
    %vm114 = vcmask 261120
    %v116 = vsel %vm114, %v97, 0
    %118 = vmatpush.bf16.msra.mxu0 0
    %119 = vmatpush.bf16.msra.mxu0 0
    %120 = vmatpush.bf16.msra.mxu0 0
    %121 = vmatpush.bf16.msra.mxu0 0
    %122 = vmatpush.bf16.msra.mxu0 0
    %123 = vmatpush.bf16.msra.mxu0 0
    %124 = vmatpush.bf16.msra.mxu0 %v111
    %125 = vmatpush.bf16.msra.mxu0 %v110
    %126 = vmatmul.bf16.gmra.mxu0 %v116
    %v127 = vpop.f32.mrf.mxu0
    %v128 = vadd.f32 0.0, %v127
    %v129 = vpop.f32.mrf.mxu0
    %130 = vdwg.mxu0
    %v131 = vadd.f32 %v96, %v128
    %v132 = vxor.u32 %v131, 2147483648
    %v133 = vmul.f32 %v132, 1.442695
    %v134 = vpow.pop %v133
    %v135 = vadd.f32 %v134, 1.0
    %v136 = vrcp.pop %v135
    %v137 = vmul.f32 %v135, %v136
    %v138 = vsub.f32 1.0, %v137
    %v139 = vmul.f32 %v136, %v138
    %v140 = vadd.f32 %v136, %v139
    %vm141 = vweird.f32 %v135
    %vm142 = vweird.f32 %v136
    %vm143 = vmor %vm141, %vm142
    %v144 = vsel %vm143, %v136, %v140
    %v145 = vand.u32 2147483647, %v135
    %vm146 = vcmp.eq.f32.partialorder %v145, 8.507059e+37
    %v147 = vand.u32 %v135, 2147483648
    %v148 = vor.u32 1.1754944e-38, %v147
    %v149 = vsel %vm146, %v148, %v144
    %v150 = vmul.f32 1.0, %v149
    %v151 = vtanh.pop %v131
    %153 = vrot.lane.b32.xlu0 %v89, 32
    %v154 = vpop.permute.xlu0 %153
    %v156 = vmul.f32 %v150, %v154
    %158 = vrot.lane.b32.xlu0 %v151, 64
    %v159 = vpop.permute.xlu0 %158
    %v161 = vmul.f32 %v150, %v159
    %163 = vrot.lane.b32.xlu0 %v161, 32
    %v164 = vpop.permute.xlu0 %163
    %v166 = vadd.f32 %v156, %v164
    %v167 = vtanh.pop %v166
    %169 = vrot.lane.b32.xlu0 %v167, 64
    %v170 = vpop.permute.xlu0 %169
    %v172 = vmul.f32 %v150, %v170
    %v173 = vpack.c.bf16 %v172, %v172
    %175 = vrot.lane.b32.xlu0 %v173, 32
    %v176 = vpop.permute.xlu0 %175
    %vm178 = vcmask 257024
    %179 = vst.msk [vmem:[#allocation5] sm:$0xf] %vm178, %v176
    %s180 = scalar_lea.vmem %s0, 4
    %v181 = vld [vmem:[%s180] sm:$0xf]
    %v182 = vunpack.c.l.bf16 %v181
    %v183 = vadd.f32 %v182, %v92
    %v184 = vld [vmem:[#allocation7] sm:$0xf]
    %v185 = vld [vmem:[#allocation7 + $0x4] sm:$0xf]
    %v186 = vld [vmem:[#allocation7 + $0x8] sm:$0xf]
    %v187 = vld [vmem:[#allocation7 + $0xc] sm:$0xf]
    %v188 = vunpack.c.l.b16 %v173
    %v189 = vpack.c.b16 %v188, %v188
    %190 = vrot.lane.b32.xlu0 %v189, 32
    %v191 = vpop.permute.xlu0 %190
    %v196 = vunpack.c.l.b16 %v184
    %v197 = vunpack.c.l.b16 %v185
    %v198 = vunpack.c.l.b16 %v186
    %v199 = vunpack.c.l.b16 %v187
    %v200 = vpack.c.b16 %v197, %v196
    %v201 = vpack.c.b16 %v199, %v198
    %v205 = vsel %vm114, %v191, 0
    %207 = vmatpush.bf16.msra.mxu0 0
    %208 = vmatpush.bf16.msra.mxu0 0
    %209 = vmatpush.bf16.msra.mxu0 0
    %210 = vmatpush.bf16.msra.mxu0 0
    %211 = vmatpush.bf16.msra.mxu0 0
    %212 = vmatpush.bf16.msra.mxu0 0
    %213 = vmatpush.bf16.msra.mxu0 %v201
    %214 = vmatpush.bf16.msra.mxu0 %v200
    %215 = vmatmul.bf16.gmra.mxu0 %v205
    %v216 = vpop.f32.mrf.mxu0
    %v217 = vadd.f32 0.0, %v216
    %v218 = vpop.f32.mrf.mxu0
    %219 = vdwg.mxu0
    %v220 = vadd.f32 %v183, %v217
    %v221 = vxor.u32 %v220, 2147483648
    %v222 = vmul.f32 %v221, 1.442695
    %v223 = vpow.pop %v222
    %v224 = vadd.f32 %v223, 1.0
    %v225 = vrcp.pop %v224
    %v226 = vmul.f32 %v224, %v225
    %v227 = vsub.f32 1.0, %v226
    %v228 = vmul.f32 %v225, %v227
    %v229 = vadd.f32 %v225, %v228
    %vm230 = vweird.f32 %v224
    %vm231 = vweird.f32 %v225
    %vm232 = vmor %vm230, %vm231
    %v233 = vsel %vm232, %v225, %v229
    %v234 = vand.u32 2147483647, %v224
    %vm235 = vcmp.eq.f32.partialorder %v234, 8.507059e+37
    %v236 = vand.u32 %v224, 2147483648
    %v237 = vor.u32 1.1754944e-38, %v236
    %v238 = vsel %vm235, %v237, %v233
    %v239 = vmul.f32 1.0, %v238
    %v240 = vtanh.pop %v220
    %v241 = vmul.f32 %v239, %v166
    %243 = vrot.lane.b32.xlu0 %v240, 64
    %v244 = vpop.permute.xlu0 %243
    %v246 = vmul.f32 %v239, %v244
    %248 = vrot.lane.b32.xlu0 %v246, 32
    %v249 = vpop.permute.xlu0 %248
    %v251 = vadd.f32 %v241, %v249
    %v252 = vtanh.pop %v251
    %254 = vrot.lane.b32.xlu0 %v252, 64
    %v255 = vpop.permute.xlu0 %254
    %v257 = vmul.f32 %v239, %v255
    %v258 = vpack.c.bf16 %v257, %v257
    %260 = vrot.lane.b32.xlu0 %v258, 32
    %v261 = vpop.permute.xlu0 %260
    %s263 = scalar_lea.vmem [#allocation5], 4
    %264 = vst.msk [vmem:[%s263] sm:$0xf] %vm178, %v261
    %s265 = scalar_lea.vmem %s0, 8
    %v266 = vld [vmem:[%s265] sm:$0xf]
    %v267 = vunpack.c.l.bf16 %v266
    %v268 = vadd.f32 %v267, %v92
    %v269 = vld [vmem:[#allocation7] sm:$0xf]
    %v270 = vld [vmem:[#allocation7 + $0x4] sm:$0xf]
    %v271 = vld [vmem:[#allocation7 + $0x8] sm:$0xf]
    %v272 = vld [vmem:[#allocation7 + $0xc] sm:$0xf]
    %v273 = vunpack.c.l.b16 %v258
    %v274 = vpack.c.b16 %v273, %v273
    %275 = vrot.lane.b32.xlu0 %v274, 32
    %v276 = vpop.permute.xlu0 %275
    %v281 = vunpack.c.l.b16 %v269
    %v282 = vunpack.c.l.b16 %v270
    %v283 = vunpack.c.l.b16 %v271
    %v284 = vunpack.c.l.b16 %v272
    %v285 = vpack.c.b16 %v282, %v281
    %v286 = vpack.c.b16 %v284, %v283
    %v290 = vsel %vm114, %v276, 0
    %292 = vmatpush.bf16.msra.mxu0 0
    %293 = vmatpush.bf16.msra.mxu0 0
    %294 = vmatpush.bf16.msra.mxu0 0
    %295 = vmatpush.bf16.msra.mxu0 0
    %296 = vmatpush.bf16.msra.mxu0 0
    %297 = vmatpush.bf16.msra.mxu0 0
    %298 = vmatpush.bf16.msra.mxu0 %v286
    %299 = vmatpush.bf16.msra.mxu0 %v285
    %300 = vmatmul.bf16.gmra.mxu0 %v290
    %v301 = vpop.f32.mrf.mxu0
    %v302 = vadd.f32 0.0, %v301
    %v303 = vpop.f32.mrf.mxu0
    %304 = vdwg.mxu0
    %v305 = vadd.f32 %v268, %v302
    %v306 = vxor.u32 %v305, 2147483648
    %v307 = vmul.f32 %v306, 1.442695
    %v308 = vpow.pop %v307
    %v309 = vadd.f32 %v308, 1.0
    %v310 = vrcp.pop %v309
    %v311 = vmul.f32 %v309, %v310
    %v312 = vsub.f32 1.0, %v311
    %v313 = vmul.f32 %v310, %v312
    %v314 = vadd.f32 %v310, %v313
    %vm315 = vweird.f32 %v309
    %vm316 = vweird.f32 %v310
    %vm317 = vmor %vm315, %vm316
    %v318 = vsel %vm317, %v310, %v314
    %v319 = vand.u32 2147483647, %v309
    %vm320 = vcmp.eq.f32.partialorder %v319, 8.507059e+37
    %v321 = vand.u32 %v309, 2147483648
    %v322 = vor.u32 1.1754944e-38, %v321
    %v323 = vsel %vm320, %v322, %v318
    %v324 = vmul.f32 1.0, %v323
    %v325 = vtanh.pop %v305
    %v326 = vmul.f32 %v324, %v251
    %328 = vrot.lane.b32.xlu0 %v325, 64
    %v329 = vpop.permute.xlu0 %328
    %v331 = vmul.f32 %v324, %v329
    %333 = vrot.lane.b32.xlu0 %v331, 32
    %v334 = vpop.permute.xlu0 %333
    %v336 = vadd.f32 %v326, %v334
    %v337 = vtanh.pop %v336
    %339 = vrot.lane.b32.xlu0 %v337, 64
    %v340 = vpop.permute.xlu0 %339
    %v342 = vmul.f32 %v324, %v340
    %v343 = vpack.c.bf16 %v342, %v342
    %345 = vrot.lane.b32.xlu0 %v343, 32
    %v346 = vpop.permute.xlu0 %345
    %s348 = scalar_lea.vmem [#allocation5], 8
    %349 = vst.msk [vmem:[%s348] sm:$0xf] %vm178, %v346
    %s350 = scalar_lea.vmem %s0, 12
    %v351 = vld [vmem:[%s350] sm:$0xf]
    %v352 = vunpack.c.l.bf16 %v351
    %v353 = vadd.f32 %v352, %v92
    %v354 = vld [vmem:[#allocation7] sm:$0xf]
    %v355 = vld [vmem:[#allocation7 + $0x4] sm:$0xf]
    %v356 = vld [vmem:[#allocation7 + $0x8] sm:$0xf]
    %v357 = vld [vmem:[#allocation7 + $0xc] sm:$0xf]
    %v358 = vunpack.c.l.b16 %v343
    %v359 = vpack.c.b16 %v358, %v358
    %360 = vrot.lane.b32.xlu0 %v359, 32
    %v361 = vpop.permute.xlu0 %360
    %v366 = vunpack.c.l.b16 %v354
    %v367 = vunpack.c.l.b16 %v355
    %v368 = vunpack.c.l.b16 %v356
    %v369 = vunpack.c.l.b16 %v357
    %v370 = vpack.c.b16 %v367, %v366
    %v371 = vpack.c.b16 %v369, %v368
    %v375 = vsel %vm114, %v361, 0
    %377 = vmatpush.bf16.msra.mxu0 0
    %378 = vmatpush.bf16.msra.mxu0 0
    %379 = vmatpush.bf16.msra.mxu0 0
    %380 = vmatpush.bf16.msra.mxu0 0
    %381 = vmatpush.bf16.msra.mxu0 0
    %382 = vmatpush.bf16.msra.mxu0 0
    %383 = vmatpush.bf16.msra.mxu0 %v371
    %384 = vmatpush.bf16.msra.mxu0 %v370
    %385 = vmatmul.bf16.gmra.mxu0 %v375
    %v386 = vpop.f32.mrf.mxu0
    %v387 = vadd.f32 0.0, %v386
    %v388 = vpop.f32.mrf.mxu0
    %389 = vdwg.mxu0
    %v390 = vadd.f32 %v353, %v387
    %v391 = vxor.u32 %v390, 2147483648
    %v392 = vmul.f32 %v391, 1.442695
    %v393 = vpow.pop %v392
    %v394 = vadd.f32 %v393, 1.0
    %v395 = vrcp.pop %v394
    %v396 = vmul.f32 %v394, %v395
    %v397 = vsub.f32 1.0, %v396
    %v398 = vmul.f32 %v395, %v397
    %v399 = vadd.f32 %v395, %v398
    %vm400 = vweird.f32 %v394
    %vm401 = vweird.f32 %v395
    %vm402 = vmor %vm400, %vm401
    %v403 = vsel %vm402, %v395, %v399
    %v404 = vand.u32 2147483647, %v394
    %vm405 = vcmp.eq.f32.partialorder %v404, 8.507059e+37
    %v406 = vand.u32 %v394, 2147483648
    %v407 = vor.u32 1.1754944e-38, %v406
    %v408 = vsel %vm405, %v407, %v403
    %v409 = vmul.f32 1.0, %v408
    %v410 = vtanh.pop %v390
    %v411 = vmul.f32 %v409, %v336
    %413 = vrot.lane.b32.xlu0 %v410, 64
    %v414 = vpop.permute.xlu0 %413
    %v416 = vmul.f32 %v409, %v414
    %418 = vrot.lane.b32.xlu0 %v416, 32
    %v419 = vpop.permute.xlu0 %418
    %v421 = vadd.f32 %v411, %v419
    %v422 = vtanh.pop %v421
    %424 = vrot.lane.b32.xlu0 %v422, 64
    %v425 = vpop.permute.xlu0 %424
    %v427 = vmul.f32 %v409, %v425
    %v428 = vpack.c.bf16 %v427, %v427
    %430 = vrot.lane.b32.xlu0 %v428, 32
    %v431 = vpop.permute.xlu0 %430
    %s433 = scalar_lea.vmem [#allocation5], 12
    %434 = vst.msk [vmem:[%s433] sm:$0xf] %vm178, %v431
    %s435 = scalar_lea.vmem %s0, 16
    %v436 = vld [vmem:[%s435] sm:$0xf]
    %v437 = vunpack.c.l.bf16 %v436
    %v438 = vadd.f32 %v437, %v92
    %v439 = vld [vmem:[#allocation7] sm:$0xf]
    %v440 = vld [vmem:[#allocation7 + $0x4] sm:$0xf]
    %v441 = vld [vmem:[#allocation7 + $0x8] sm:$0xf]
    %v442 = vld [vmem:[#allocation7 + $0xc] sm:$0xf]
    %v443 = vunpack.c.l.b16 %v428
    %v444 = vpack.c.b16 %v443, %v443
    %445 = vrot.lane.b32.xlu0 %v444, 32
    %v446 = vpop.permute.xlu0 %445
    %v451 = vunpack.c.l.b16 %v439
    %v452 = vunpack.c.l.b16 %v440
    %v453 = vunpack.c.l.b16 %v441
    %v454 = vunpack.c.l.b16 %v442
    %v455 = vpack.c.b16 %v452, %v451
    %v456 = vpack.c.b16 %v454, %v453
    %v460 = vsel %vm114, %v446, 0
    %462 = vmatpush.bf16.msra.mxu0 0
    %463 = vmatpush.bf16.msra.mxu0 0
    %464 = vmatpush.bf16.msra.mxu0 0
    %465 = vmatpush.bf16.msra.mxu0 0
    %466 = vmatpush.bf16.msra.mxu0 0
    %467 = vmatpush.bf16.msra.mxu0 0
    %468 = vmatpush.bf16.msra.mxu0 %v456
    %469 = vmatpush.bf16.msra.mxu0 %v455
    %470 = vmatmul.bf16.gmra.mxu0 %v460
    %v471 = vpop.f32.mrf.mxu0
    %v472 = vadd.f32 0.0, %v471
    %v473 = vpop.f32.mrf.mxu0
    %474 = vdwg.mxu0
    %v475 = vadd.f32 %v438, %v472
    %v476 = vxor.u32 %v475, 2147483648
    %v477 = vmul.f32 %v476, 1.442695
    %v478 = vpow.pop %v477
    %v479 = vadd.f32 %v478, 1.0
    %v480 = vrcp.pop %v479
    %v481 = vmul.f32 %v479, %v480
    %v482 = vsub.f32 1.0, %v481
    %v483 = vmul.f32 %v480, %v482
    %v484 = vadd.f32 %v480, %v483
    %vm485 = vweird.f32 %v479
    %vm486 = vweird.f32 %v480
    %vm487 = vmor %vm485, %vm486
    %v488 = vsel %vm487, %v480, %v484
    %v489 = vand.u32 2147483647, %v479
    %vm490 = vcmp.eq.f32.partialorder %v489, 8.507059e+37
    %v491 = vand.u32 %v479, 2147483648
    %v492 = vor.u32 1.1754944e-38, %v491
    %v493 = vsel %vm490, %v492, %v488
    %v494 = vmul.f32 1.0, %v493
    %v495 = vtanh.pop %v475
    %v496 = vmul.f32 %v494, %v421
    %498 = vrot.lane.b32.xlu0 %v495, 64
    %v499 = vpop.permute.xlu0 %498
    %v501 = vmul.f32 %v494, %v499
    %503 = vrot.lane.b32.xlu0 %v501, 32
    %v504 = vpop.permute.xlu0 %503
    %v506 = vadd.f32 %v496, %v504
    %v507 = vtanh.pop %v506
    %509 = vrot.lane.b32.xlu0 %v507, 64
    %v510 = vpop.permute.xlu0 %509
    %v512 = vmul.f32 %v494, %v510
    %v513 = vpack.c.bf16 %v512, %v512
    %515 = vrot.lane.b32.xlu0 %v513, 32
    %v516 = vpop.permute.xlu0 %515
    %s518 = scalar_lea.vmem [#allocation5], 16
    %519 = vst.msk [vmem:[%s518] sm:$0xf] %vm178, %v516
    %s520 = scalar_lea.vmem %s0, 20
    %v521 = vld [vmem:[%s520] sm:$0xf]
    %v522 = vunpack.c.l.bf16 %v521
    %v523 = vadd.f32 %v522, %v92
    %v524 = vld [vmem:[#allocation7] sm:$0xf]
    %v525 = vld [vmem:[#allocation7 + $0x4] sm:$0xf]
    %v526 = vld [vmem:[#allocation7 + $0x8] sm:$0xf]
    %v527 = vld [vmem:[#allocation7 + $0xc] sm:$0xf]
    %v528 = vunpack.c.l.b16 %v513
    %v529 = vpack.c.b16 %v528, %v528
    %530 = vrot.lane.b32.xlu0 %v529, 32
    %v531 = vpop.permute.xlu0 %530
    %v536 = vunpack.c.l.b16 %v524
    %v537 = vunpack.c.l.b16 %v525
    %v538 = vunpack.c.l.b16 %v526
    %v539 = vunpack.c.l.b16 %v527
    %v540 = vpack.c.b16 %v537, %v536
    %v541 = vpack.c.b16 %v539, %v538
    %v545 = vsel %vm114, %v531, 0
    %547 = vmatpush.bf16.msra.mxu0 0
    %548 = vmatpush.bf16.msra.mxu0 0
    %549 = vmatpush.bf16.msra.mxu0 0
    %550 = vmatpush.bf16.msra.mxu0 0
    %551 = vmatpush.bf16.msra.mxu0 0
    %552 = vmatpush.bf16.msra.mxu0 0
    %553 = vmatpush.bf16.msra.mxu0 %v541
    %554 = vmatpush.bf16.msra.mxu0 %v540
    %555 = vmatmul.bf16.gmra.mxu0 %v545
    %v556 = vpop.f32.mrf.mxu0
    %v557 = vadd.f32 0.0, %v556
    %v558 = vpop.f32.mrf.mxu0
    %559 = vdwg.mxu0
    %v560 = vadd.f32 %v523, %v557
    %v561 = vxor.u32 %v560, 2147483648
    %v562 = vmul.f32 %v561, 1.442695
    %v563 = vpow.pop %v562
    %v564 = vadd.f32 %v563, 1.0
    %v565 = vrcp.pop %v564
    %v566 = vmul.f32 %v564, %v565
    %v567 = vsub.f32 1.0, %v566
    %v568 = vmul.f32 %v565, %v567
    %v569 = vadd.f32 %v565, %v568
    %vm570 = vweird.f32 %v564
    %vm571 = vweird.f32 %v565
    %vm572 = vmor %vm570, %vm571
    %v573 = vsel %vm572, %v565, %v569
    %v574 = vand.u32 2147483647, %v564
    %vm575 = vcmp.eq.f32.partialorder %v574, 8.507059e+37
    %v576 = vand.u32 %v564, 2147483648
    %v577 = vor.u32 1.1754944e-38, %v576
    %v578 = vsel %vm575, %v577, %v573
    %v579 = vmul.f32 1.0, %v578
    %v580 = vtanh.pop %v560
    %v581 = vmul.f32 %v579, %v506
    %583 = vrot.lane.b32.xlu0 %v580, 64
    %v584 = vpop.permute.xlu0 %583
    %v586 = vmul.f32 %v579, %v584
    %588 = vrot.lane.b32.xlu0 %v586, 32
    %v589 = vpop.permute.xlu0 %588
    %v591 = vadd.f32 %v581, %v589
    %v592 = vtanh.pop %v591
    %594 = vrot.lane.b32.xlu0 %v592, 64
    %v595 = vpop.permute.xlu0 %594
    %v597 = vmul.f32 %v579, %v595
    %v598 = vpack.c.bf16 %v597, %v597
    %600 = vrot.lane.b32.xlu0 %v598, 32
    %v601 = vpop.permute.xlu0 %600
    %s603 = scalar_lea.vmem [#allocation5], 20
    %604 = vst.msk [vmem:[%s603] sm:$0xf] %vm178, %v601
    %s605 = scalar_lea.vmem %s0, 24
    %v606 = vld [vmem:[%s605] sm:$0xf]
    %v607 = vunpack.c.l.bf16 %v606
    %v608 = vadd.f32 %v607, %v92
    %v609 = vld [vmem:[#allocation7] sm:$0xf]
    %v610 = vld [vmem:[#allocation7 + $0x4] sm:$0xf]
    %v611 = vld [vmem:[#allocation7 + $0x8] sm:$0xf]
    %v612 = vld [vmem:[#allocation7 + $0xc] sm:$0xf]
    %v613 = vunpack.c.l.b16 %v598
    %v614 = vpack.c.b16 %v613, %v613
    %615 = vrot.lane.b32.xlu0 %v614, 32
    %v616 = vpop.permute.xlu0 %615
    %v621 = vunpack.c.l.b16 %v609
    %v622 = vunpack.c.l.b16 %v610
    %v623 = vunpack.c.l.b16 %v611
    %v624 = vunpack.c.l.b16 %v612
    %v625 = vpack.c.b16 %v622, %v621
    %v626 = vpack.c.b16 %v624, %v623
    %v630 = vsel %vm114, %v616, 0
    %632 = vmatpush.bf16.msra.mxu0 0
    %633 = vmatpush.bf16.msra.mxu0 0
    %634 = vmatpush.bf16.msra.mxu0 0
    %635 = vmatpush.bf16.msra.mxu0 0
    %636 = vmatpush.bf16.msra.mxu0 0
    %637 = vmatpush.bf16.msra.mxu0 0
    %638 = vmatpush.bf16.msra.mxu0 %v626
    %639 = vmatpush.bf16.msra.mxu0 %v625
    %640 = vmatmul.bf16.gmra.mxu0 %v630
    %v641 = vpop.f32.mrf.mxu0
    %v642 = vadd.f32 0.0, %v641
    %v643 = vpop.f32.mrf.mxu0
    %644 = vdwg.mxu0
    %v645 = vadd.f32 %v608, %v642
    %v646 = vxor.u32 %v645, 2147483648
    %v647 = vmul.f32 %v646, 1.442695
    %v648 = vpow.pop %v647
    %v649 = vadd.f32 %v648, 1.0
    %v650 = vrcp.pop %v649
    %v651 = vmul.f32 %v649, %v650
    %v652 = vsub.f32 1.0, %v651
    %v653 = vmul.f32 %v650, %v652
    %v654 = vadd.f32 %v650, %v653
    %vm655 = vweird.f32 %v649
    %vm656 = vweird.f32 %v650
    %vm657 = vmor %vm655, %vm656
    %v658 = vsel %vm657, %v650, %v654
    %v659 = vand.u32 2147483647, %v649
    %vm660 = vcmp.eq.f32.partialorder %v659, 8.507059e+37
    %v661 = vand.u32 %v649, 2147483648
    %v662 = vor.u32 1.1754944e-38, %v661
    %v663 = vsel %vm660, %v662, %v658
    %v664 = vmul.f32 1.0, %v663
    %v665 = vtanh.pop %v645
    %v666 = vmul.f32 %v664, %v591
    %668 = vrot.lane.b32.xlu0 %v665, 64
    %v669 = vpop.permute.xlu0 %668
    %v671 = vmul.f32 %v664, %v669
    %673 = vrot.lane.b32.xlu0 %v671, 32
    %v674 = vpop.permute.xlu0 %673
    %v676 = vadd.f32 %v666, %v674
    %v677 = vtanh.pop %v676
    %679 = vrot.lane.b32.xlu0 %v677, 64
    %v680 = vpop.permute.xlu0 %679
    %v682 = vmul.f32 %v664, %v680
    %v683 = vpack.c.bf16 %v682, %v682
    %685 = vrot.lane.b32.xlu0 %v683, 32
    %v686 = vpop.permute.xlu0 %685
    %s688 = scalar_lea.vmem [#allocation5], 24
    %689 = vst.msk [vmem:[%s688] sm:$0xf] %vm178, %v686
    %s690 = scalar_lea.vmem %s0, 28
    %v691 = vld [vmem:[%s690] sm:$0xf]
    %v692 = vunpack.c.l.bf16 %v691
    %v693 = vadd.f32 %v692, %v92
    %v694 = vld [vmem:[#allocation7] sm:$0xf]
    %v695 = vld [vmem:[#allocation7 + $0x4] sm:$0xf]
    %v696 = vld [vmem:[#allocation7 + $0x8] sm:$0xf]
    %v697 = vld [vmem:[#allocation7 + $0xc] sm:$0xf]
    %v698 = vunpack.c.l.b16 %v683
    %v699 = vpack.c.b16 %v698, %v698
    %700 = vrot.lane.b32.xlu0 %v699, 32
    %v701 = vpop.permute.xlu0 %700
    %v706 = vunpack.c.l.b16 %v694
    %v707 = vunpack.c.l.b16 %v695
    %v708 = vunpack.c.l.b16 %v696
    %v709 = vunpack.c.l.b16 %v697
    %v710 = vpack.c.b16 %v707, %v706
    %v711 = vpack.c.b16 %v709, %v708
    %v715 = vsel %vm114, %v701, 0
    %717 = vmatpush.bf16.msra.mxu0 0
    %718 = vmatpush.bf16.msra.mxu0 0
    %719 = vmatpush.bf16.msra.mxu0 0
    %720 = vmatpush.bf16.msra.mxu0 0
    %721 = vmatpush.bf16.msra.mxu0 0
    %722 = vmatpush.bf16.msra.mxu0 0
    %723 = vmatpush.bf16.msra.mxu0 %v711
    %724 = vmatpush.bf16.msra.mxu0 %v710
    %725 = vmatmul.bf16.gmra.mxu0 %v715
    %v726 = vpop.f32.mrf.mxu0
    %v727 = vadd.f32 0.0, %v726
    %v728 = vpop.f32.mrf.mxu0
    %729 = vdwg.mxu0
    %v730 = vadd.f32 %v693, %v727
    %v731 = vxor.u32 %v730, 2147483648
    %v732 = vmul.f32 %v731, 1.442695
    %v733 = vpow.pop %v732
    %v734 = vadd.f32 %v733, 1.0
    %v735 = vrcp.pop %v734
    %v736 = vmul.f32 %v734, %v735
    %v737 = vsub.f32 1.0, %v736
    %v738 = vmul.f32 %v735, %v737
    %v739 = vadd.f32 %v735, %v738
    %vm740 = vweird.f32 %v734
    %vm741 = vweird.f32 %v735
    %vm742 = vmor %vm740, %vm741
    %v743 = vsel %vm742, %v735, %v739
    %v744 = vand.u32 2147483647, %v734
    %vm745 = vcmp.eq.f32.partialorder %v744, 8.507059e+37
    %v746 = vand.u32 %v734, 2147483648
    %v747 = vor.u32 1.1754944e-38, %v746
    %v748 = vsel %vm745, %v747, %v743
    %v749 = vmul.f32 1.0, %v748
    %v750 = vtanh.pop %v730
    %v751 = vmul.f32 %v749, %v676
    %753 = vrot.lane.b32.xlu0 %v750, 64
    %v754 = vpop.permute.xlu0 %753
    %v756 = vmul.f32 %v749, %v754
    %758 = vrot.lane.b32.xlu0 %v756, 32
    %v759 = vpop.permute.xlu0 %758
    %v761 = vadd.f32 %v751, %v759
    %v762 = vtanh.pop %v761
    %764 = vrot.lane.b32.xlu0 %v762, 64
    %v765 = vpop.permute.xlu0 %764
    %v767 = vmul.f32 %v749, %v765
    %v768 = vpack.c.bf16 %v767, %v767
    %770 = vrot.lane.b32.xlu0 %v768, 32
    %v771 = vpop.permute.xlu0 %770
    %s773 = scalar_lea.vmem [#allocation5], 28
    %774 = vst.msk [vmem:[%s773] sm:$0xf] %vm178, %v771
    %v775 = vld [vmem:[#allocation5] sm:$0xf]
    %v776 = vld [vmem:[#allocation5 + $0x4] sm:$0xf]
    %v777 = vld [vmem:[#allocation5 + $0x8] sm:$0xf]
    %v778 = vld [vmem:[#allocation5 + $0xc] sm:$0xf]
    %v779 = vld [vmem:[#allocation5 + $0x10] sm:$0xf]
    %v780 = vld [vmem:[#allocation5 + $0x14] sm:$0xf]
    %v781 = vld [vmem:[#allocation5 + $0x18] sm:$0xf]
    %v782 = vld [vmem:[#allocation5 + $0x1c] sm:$0xf]
    %v783 = vld [vmem:[#allocation12] sm:$0xf]
    %v784 = vld [vmem:[#allocation12 + $0x4] sm:$0xf]
    %v785 = vld [vmem:[#allocation12 + $0x8] sm:$0xf]
    %v786 = vld [vmem:[#allocation12 + $0xc] sm:$0xf]
    %v787 = vld [vmem:[%s5] sm:$0x1]
    %v789 = vperm.slane %v787, 0
    %v799 = vunpack.c.l.b16 %v775
    %v800 = vunpack.c.l.b16 %v776
    %v801 = vunpack.c.l.b16 %v777
    %v802 = vunpack.c.l.b16 %v778
    %v803 = vunpack.c.l.b16 %v779
    %v804 = vunpack.c.l.b16 %v780
    %v805 = vunpack.c.l.b16 %v781
    %v806 = vunpack.c.l.b16 %v782
    %v807 = vpack.c.b16 %v800, %v799
    %v808 = vpack.c.b16 %v802, %v801
    %v809 = vpack.c.b16 %v804, %v803
    %v810 = vpack.c.b16 %v806, %v805
    %v815 = vunpack.c.l.b16 %v783
    %v816 = vunpack.c.l.b16 %v784
    %v817 = vunpack.c.l.b16 %v785
    %v818 = vunpack.c.l.b16 %v786
    %v819 = vpack.c.b16 %v816, %v815
    %v820 = vpack.c.b16 %v818, %v817
    %v824 = vsel %vm114, %v807, 0
    %v827 = vsel %vm114, %v808, 0
    %v830 = vsel %vm114, %v809, 0
    %v833 = vsel %vm114, %v810, 0
    %835 = vmatpush.bf16.msra.mxu0 0
    %836 = vmatpush.bf16.msra.mxu0 0
    %837 = vmatpush.bf16.msra.mxu0 0
    %838 = vmatpush.bf16.msra.mxu0 0
    %839 = vmatpush.bf16.msra.mxu0 0
    %840 = vmatpush.bf16.msra.mxu0 0
    %841 = vmatpush.bf16.msra.mxu0 %v820
    %842 = vmatpush.bf16.msra.mxu0 %v819
    %843 = vmatmul.bf16.gmra.mxu0 %v824
    %v844 = vpop.f32.mrf.mxu0
    %v845 = vadd.f32 %v789, %v844
    %v846 = vpop.f32.mrf.mxu0
    %v847 = vadd.f32 %v789, %v846
    %848 = vmatmul.bf16.gmra.mxu0 %v827
    %v849 = vpop.f32.mrf.mxu0
    %v850 = vadd.f32 %v789, %v849
    %v851 = vpop.f32.mrf.mxu0
    %v852 = vadd.f32 %v789, %v851
    %853 = vmatmul.bf16.gmra.mxu0 %v830
    %v854 = vpop.f32.mrf.mxu0
    %v855 = vadd.f32 %v789, %v854
    %v856 = vpop.f32.mrf.mxu0
    %v857 = vadd.f32 %v789, %v856
    %858 = vmatmul.bf16.gmra.mxu0 %v833
    %v859 = vpop.f32.mrf.mxu0
    %v860 = vadd.f32 %v789, %v859
    %v861 = vpop.f32.mrf.mxu0
    %v862 = vadd.f32 %v789, %v861
    %863 = vdwg.mxu0
    %864 = vst [vmem:[#allocation6] sm:$0xff] %v845
    %865 = vst [vmem:[#allocation6 + $0x8] sm:$0xff] %v847
    %866 = vst [vmem:[#allocation6 + $0x10] sm:$0xff] %v850
    %867 = vst [vmem:[#allocation6 + $0x18] sm:$0xff] %v852
    %868 = vst [vmem:[#allocation6 + $0x20] sm:$0xff] %v855
    %869 = vst [vmem:[#allocation6 + $0x28] sm:$0xff] %v857
    %870 = vst [vmem:[#allocation6 + $0x30] sm:$0xff] %v860
    %871 = vst [vmem:[#allocation6 + $0x38] sm:$0xff] %v862
    %873 = vrot.lane.b32.xlu0 %v767, 32
    %v874 = vpop.permute.xlu0 %873
    %876 = vst.msk [vmem:[#allocation2] sm:$0xff] %vm114, %v874
    %878 = vrot.lane.b32.xlu0 %v761, 96
    %v879 = vpop.permute.xlu0 %878
    %881 = vst.msk [vmem:[#allocation3] sm:$0xff] %vm114, %v879
    %s882 = scalar_lea.vmem [#allocation2], 8
    %v883 = vld [vmem:[%s882] sm:$0xff]
    %s884 = scalar_lea.vmem [#allocation3], 8
    %v885 = vld [vmem:[%s884] sm:$0xff]
    %v886 = vld [vmem:[#allocation4] sm:$0xff]
    %v887 = vld [vmem:[#allocation6] sm:$0xff]
    %v888 = vpack.c.bf16 %v883, %v883
    %v889 = vld [vmem:[#allocation10] sm:$0xf]
    %v890 = vld [vmem:[#allocation10 + $0x4] sm:$0xf]
    %v891 = vld [vmem:[#allocation10 + $0x8] sm:$0xf]
    %v892 = vld [vmem:[#allocation10 + $0xc] sm:$0xf]
    %v897 = vunpack.c.l.b16 %v889
    %v898 = vunpack.c.l.b16 %v890
    %v899 = vunpack.c.l.b16 %v891
    %v900 = vunpack.c.l.b16 %v892
    %v901 = vpack.c.b16 %v898, %v897
    %v902 = vpack.c.b16 %v900, %v899
    %v906 = vsel %vm114, %v888, 0
    %908 = vmatpush.bf16.msra.mxu0 0
    %909 = vmatpush.bf16.msra.mxu0 0
    %910 = vmatpush.bf16.msra.mxu0 0
    %911 = vmatpush.bf16.msra.mxu0 0
    %912 = vmatpush.bf16.msra.mxu0 0
    %913 = vmatpush.bf16.msra.mxu0 0
    %914 = vmatpush.bf16.msra.mxu0 %v902
    %915 = vmatpush.bf16.msra.mxu0 %v901
    %916 = vmatmul.bf16.gmra.mxu0 %v906
    %v917 = vpop.f32.mrf.mxu0
    %v918 = vadd.f32 0.0, %v917
    %v919 = vpop.f32.mrf.mxu0
    %920 = vdwg.mxu0
    %v921 = vadd.f32 %v887, %v918
    %v922 = vxor.u32 %v921, 2147483648
    %v923 = vmul.f32 %v922, 1.442695
    %v924 = vpow.pop %v923
    %v925 = vadd.f32 %v924, 1.0
    %v926 = vrcp.pop %v925
    %v927 = vmul.f32 %v925, %v926
    %v928 = vsub.f32 1.0, %v927
    %v929 = vmul.f32 %v926, %v928
    %v930 = vadd.f32 %v926, %v929
    %vm931 = vweird.f32 %v925
    %vm932 = vweird.f32 %v926
    %vm933 = vmor %vm931, %vm932
    %v934 = vsel %vm933, %v926, %v930
    %v935 = vand.u32 2147483647, %v925
    %vm936 = vcmp.eq.f32.partialorder %v935, 8.507059e+37
    %v937 = vand.u32 %v925, 2147483648
    %v938 = vor.u32 1.1754944e-38, %v937
    %v939 = vsel %vm936, %v938, %v934
    %v940 = vmul.f32 1.0, %v939
    %v941 = vtanh.pop %v921
    %943 = vrot.lane.b32.xlu0 %v885, 32
    %v944 = vpop.permute.xlu0 %943
    %v946 = vmul.f32 %v940, %v944
    %948 = vrot.lane.b32.xlu0 %v941, 64
    %v949 = vpop.permute.xlu0 %948
    %v951 = vmul.f32 %v940, %v949
    %953 = vrot.lane.b32.xlu0 %v951, 32
    %v954 = vpop.permute.xlu0 %953
    %v956 = vadd.f32 %v946, %v954
    %v957 = vtanh.pop %v956
    %959 = vrot.lane.b32.xlu0 %v957, 64
    %v960 = vpop.permute.xlu0 %959
    %v962 = vmul.f32 %v940, %v960
    %964 = vrot.lane.b32.xlu0 %v962, 32
    %v965 = vpop.permute.xlu0 %964
    %v967 = vmax.f32 %v886, %v965
    %s968 = scalar_lea.vmem [#allocation6], 8
    %v969 = vld [vmem:[%s968] sm:$0xff]
    %v970 = vpack.c.bf16 %v962, %v962
    %972 = vrot.lane.b32.xlu0 %v970, 32
    %v973 = vpop.permute.xlu0 %972
    %v975 = vsel %vm114, %v973, 0
    %977 = vmatpush.bf16.msra.mxu0 0
    %978 = vmatpush.bf16.msra.mxu0 0
    %979 = vmatpush.bf16.msra.mxu0 0
    %980 = vmatpush.bf16.msra.mxu0 0
    %981 = vmatpush.bf16.msra.mxu0 0
    %982 = vmatpush.bf16.msra.mxu0 0
    %983 = vmatpush.bf16.msra.mxu0 %v902
    %984 = vmatpush.bf16.msra.mxu0 %v901
    %985 = vmatmul.bf16.gmra.mxu0 %v975
    %v986 = vpop.f32.mrf.mxu0
    %v987 = vadd.f32 0.0, %v986
    %v988 = vpop.f32.mrf.mxu0
    %989 = vdwg.mxu0
    %v990 = vadd.f32 %v969, %v987
    %v991 = vxor.u32 %v990, 2147483648
    %v992 = vmul.f32 %v991, 1.442695
    %v993 = vpow.pop %v992
    %v994 = vadd.f32 %v993, 1.0
    %v995 = vrcp.pop %v994
    %v996 = vmul.f32 %v994, %v995
    %v997 = vsub.f32 1.0, %v996
    %v998 = vmul.f32 %v995, %v997
    %v999 = vadd.f32 %v995, %v998
    %vm1000 = vweird.f32 %v994
    %vm1001 = vweird.f32 %v995
    %vm1002 = vmor %vm1000, %vm1001
    %v1003 = vsel %vm1002, %v995, %v999
    %v1004 = vand.u32 2147483647, %v994
    %vm1005 = vcmp.eq.f32.partialorder %v1004, 8.507059e+37
    %v1006 = vand.u32 %v994, 2147483648
    %v1007 = vor.u32 1.1754944e-38, %v1006
    %v1008 = vsel %vm1005, %v1007, %v1003
    %v1009 = vmul.f32 1.0, %v1008
    %v1010 = vtanh.pop %v990
    %v1011 = vmul.f32 %v1009, %v956
    %1013 = vrot.lane.b32.xlu0 %v1010, 64
    %v1014 = vpop.permute.xlu0 %1013
    %v1016 = vmul.f32 %v1009, %v1014
    %1018 = vrot.lane.b32.xlu0 %v1016, 32
    %v1019 = vpop.permute.xlu0 %1018
    %v1021 = vadd.f32 %v1011, %v1019
    %v1022 = vtanh.pop %v1021
    %1024 = vrot.lane.b32.xlu0 %v1022, 64
    %v1025 = vpop.permute.xlu0 %1024
    %v1027 = vmul.f32 %v1009, %v1025
    %1029 = vrot.lane.b32.xlu0 %v1027, 32
    %v1030 = vpop.permute.xlu0 %1029
    %v1032 = vmax.f32 %v967, %v1030
    %s1033 = scalar_lea.vmem [#allocation6], 16
    %v1034 = vld [vmem:[%s1033] sm:$0xff]
    %v1035 = vpack.c.bf16 %v1027, %v1027
    %1037 = vrot.lane.b32.xlu0 %v1035, 32
    %v1038 = vpop.permute.xlu0 %1037
    %v1040 = vsel %vm114, %v1038, 0
    %1042 = vmatpush.bf16.msra.mxu0 0
    %1043 = vmatpush.bf16.msra.mxu0 0
    %1044 = vmatpush.bf16.msra.mxu0 0
    %1045 = vmatpush.bf16.msra.mxu0 0
    %1046 = vmatpush.bf16.msra.mxu0 0
    %1047 = vmatpush.bf16.msra.mxu0 0
    %1048 = vmatpush.bf16.msra.mxu0 %v902
    %1049 = vmatpush.bf16.msra.mxu0 %v901
    %1050 = vmatmul.bf16.gmra.mxu0 %v1040
    %v1051 = vpop.f32.mrf.mxu0
    %v1052 = vadd.f32 0.0, %v1051
    %v1053 = vpop.f32.mrf.mxu0
    %1054 = vdwg.mxu0
    %v1055 = vadd.f32 %v1034, %v1052
    %v1056 = vxor.u32 %v1055, 2147483648
    %v1057 = vmul.f32 %v1056, 1.442695
    %v1058 = vpow.pop %v1057
    %v1059 = vadd.f32 %v1058, 1.0
    %v1060 = vrcp.pop %v1059
    %v1061 = vmul.f32 %v1059, %v1060
    %v1062 = vsub.f32 1.0, %v1061
    %v1063 = vmul.f32 %v1060, %v1062
    %v1064 = vadd.f32 %v1060, %v1063
    %vm1065 = vweird.f32 %v1059
    %vm1066 = vweird.f32 %v1060
    %vm1067 = vmor %vm1065, %vm1066
    %v1068 = vsel %vm1067, %v1060, %v1064
    %v1069 = vand.u32 2147483647, %v1059
    %vm1070 = vcmp.eq.f32.partialorder %v1069, 8.507059e+37
    %v1071 = vand.u32 %v1059, 2147483648
    %v1072 = vor.u32 1.1754944e-38, %v1071
    %v1073 = vsel %vm1070, %v1072, %v1068
    %v1074 = vmul.f32 1.0, %v1073
    %v1075 = vtanh.pop %v1055
    %v1076 = vmul.f32 %v1074, %v1021
    %1078 = vrot.lane.b32.xlu0 %v1075, 64
    %v1079 = vpop.permute.xlu0 %1078
    %v1081 = vmul.f32 %v1074, %v1079
    %1083 = vrot.lane.b32.xlu0 %v1081, 32
    %v1084 = vpop.permute.xlu0 %1083
    %v1086 = vadd.f32 %v1076, %v1084
    %v1087 = vtanh.pop %v1086
    %1089 = vrot.lane.b32.xlu0 %v1087, 64
    %v1090 = vpop.permute.xlu0 %1089
    %v1092 = vmul.f32 %v1074, %v1090
    %1094 = vrot.lane.b32.xlu0 %v1092, 32
    %v1095 = vpop.permute.xlu0 %1094
    %v1097 = vmax.f32 %v1032, %v1095
    %s1098 = scalar_lea.vmem [#allocation6], 24
    %v1099 = vld [vmem:[%s1098] sm:$0xff]
    %v1100 = vpack.c.bf16 %v1092, %v1092
    %1102 = vrot.lane.b32.xlu0 %v1100, 32
    %v1103 = vpop.permute.xlu0 %1102
    %v1105 = vsel %vm114, %v1103, 0
    %1107 = vmatpush.bf16.msra.mxu0 0
    %1108 = vmatpush.bf16.msra.mxu0 0
    %1109 = vmatpush.bf16.msra.mxu0 0
    %1110 = vmatpush.bf16.msra.mxu0 0
    %1111 = vmatpush.bf16.msra.mxu0 0
    %1112 = vmatpush.bf16.msra.mxu0 0
    %1113 = vmatpush.bf16.msra.mxu0 %v902
    %1114 = vmatpush.bf16.msra.mxu0 %v901
    %1115 = vmatmul.bf16.gmra.mxu0 %v1105
    %v1116 = vpop.f32.mrf.mxu0
    %v1117 = vadd.f32 0.0, %v1116
    %v1118 = vpop.f32.mrf.mxu0
    %1119 = vdwg.mxu0
    %v1120 = vadd.f32 %v1099, %v1117
    %v1121 = vxor.u32 %v1120, 2147483648
    %v1122 = vmul.f32 %v1121, 1.442695
    %v1123 = vpow.pop %v1122
    %v1124 = vadd.f32 %v1123, 1.0
    %v1125 = vrcp.pop %v1124
    %v1126 = vmul.f32 %v1124, %v1125
    %v1127 = vsub.f32 1.0, %v1126
    %v1128 = vmul.f32 %v1125, %v1127
    %v1129 = vadd.f32 %v1125, %v1128
    %vm1130 = vweird.f32 %v1124
    %vm1131 = vweird.f32 %v1125
    %vm1132 = vmor %vm1130, %vm1131
    %v1133 = vsel %vm1132, %v1125, %v1129
    %v1134 = vand.u32 2147483647, %v1124
    %vm1135 = vcmp.eq.f32.partialorder %v1134, 8.507059e+37
    %v1136 = vand.u32 %v1124, 2147483648
    %v1137 = vor.u32 1.1754944e-38, %v1136
    %v1138 = vsel %vm1135, %v1137, %v1133
    %v1139 = vmul.f32 1.0, %v1138
    %v1140 = vtanh.pop %v1120
    %v1141 = vmul.f32 %v1139, %v1086
    %1143 = vrot.lane.b32.xlu0 %v1140, 64
    %v1144 = vpop.permute.xlu0 %1143
    %v1146 = vmul.f32 %v1139, %v1144
    %1148 = vrot.lane.b32.xlu0 %v1146, 32
    %v1149 = vpop.permute.xlu0 %1148
    %v1151 = vadd.f32 %v1141, %v1149
    %v1152 = vtanh.pop %v1151
    %1154 = vrot.lane.b32.xlu0 %v1152, 64
    %v1155 = vpop.permute.xlu0 %1154
    %v1157 = vmul.f32 %v1139, %v1155
    %1159 = vrot.lane.b32.xlu0 %v1157, 32
    %v1160 = vpop.permute.xlu0 %1159
    %v1162 = vmax.f32 %v1097, %v1160
    %s1163 = scalar_lea.vmem [#allocation6], 32
    %v1164 = vld [vmem:[%s1163] sm:$0xff]
    %v1165 = vpack.c.bf16 %v1157, %v1157
    %1167 = vrot.lane.b32.xlu0 %v1165, 32
    %v1168 = vpop.permute.xlu0 %1167
    %v1170 = vsel %vm114, %v1168, 0
    %1172 = vmatpush.bf16.msra.mxu0 0
    %1173 = vmatpush.bf16.msra.mxu0 0
    %1174 = vmatpush.bf16.msra.mxu0 0
    %1175 = vmatpush.bf16.msra.mxu0 0
    %1176 = vmatpush.bf16.msra.mxu0 0
    %1177 = vmatpush.bf16.msra.mxu0 0
    %1178 = vmatpush.bf16.msra.mxu0 %v902
    %1179 = vmatpush.bf16.msra.mxu0 %v901
    %1180 = vmatmul.bf16.gmra.mxu0 %v1170
    %v1181 = vpop.f32.mrf.mxu0
    %v1182 = vadd.f32 0.0, %v1181
    %v1183 = vpop.f32.mrf.mxu0
    %1184 = vdwg.mxu0
    %v1185 = vadd.f32 %v1164, %v1182
    %v1186 = vxor.u32 %v1185, 2147483648
    %v1187 = vmul.f32 %v1186, 1.442695
    %v1188 = vpow.pop %v1187
    %v1189 = vadd.f32 %v1188, 1.0
    %v1190 = vrcp.pop %v1189
    %v1191 = vmul.f32 %v1189, %v1190
    %v1192 = vsub.f32 1.0, %v1191
    %v1193 = vmul.f32 %v1190, %v1192
    %v1194 = vadd.f32 %v1190, %v1193
    %vm1195 = vweird.f32 %v1189
    %vm1196 = vweird.f32 %v1190
    %vm1197 = vmor %vm1195, %vm1196
    %v1198 = vsel %vm1197, %v1190, %v1194
    %v1199 = vand.u32 2147483647, %v1189
    %vm1200 = vcmp.eq.f32.partialorder %v1199, 8.507059e+37
    %v1201 = vand.u32 %v1189, 2147483648
    %v1202 = vor.u32 1.1754944e-38, %v1201
    %v1203 = vsel %vm1200, %v1202, %v1198
    %v1204 = vmul.f32 1.0, %v1203
    %v1205 = vtanh.pop %v1185
    %v1206 = vmul.f32 %v1204, %v1151
    %1208 = vrot.lane.b32.xlu0 %v1205, 64
    %v1209 = vpop.permute.xlu0 %1208
    %v1211 = vmul.f32 %v1204, %v1209
    %1213 = vrot.lane.b32.xlu0 %v1211, 32
    %v1214 = vpop.permute.xlu0 %1213
    %v1216 = vadd.f32 %v1206, %v1214
    %v1217 = vtanh.pop %v1216
    %1219 = vrot.lane.b32.xlu0 %v1217, 64
    %v1220 = vpop.permute.xlu0 %1219
    %v1222 = vmul.f32 %v1204, %v1220
    %1224 = vrot.lane.b32.xlu0 %v1222, 32
    %v1225 = vpop.permute.xlu0 %1224
    %v1227 = vmax.f32 %v1162, %v1225
    %s1228 = scalar_lea.vmem [#allocation6], 40
    %v1229 = vld [vmem:[%s1228] sm:$0xff]
    %v1230 = vpack.c.bf16 %v1222, %v1222
    %1232 = vrot.lane.b32.xlu0 %v1230, 32
    %v1233 = vpop.permute.xlu0 %1232
    %v1235 = vsel %vm114, %v1233, 0
    %1237 = vmatpush.bf16.msra.mxu0 0
    %1238 = vmatpush.bf16.msra.mxu0 0
    %1239 = vmatpush.bf16.msra.mxu0 0
    %1240 = vmatpush.bf16.msra.mxu0 0
    %1241 = vmatpush.bf16.msra.mxu0 0
    %1242 = vmatpush.bf16.msra.mxu0 0
    %1243 = vmatpush.bf16.msra.mxu0 %v902
    %1244 = vmatpush.bf16.msra.mxu0 %v901
    %1245 = vmatmul.bf16.gmra.mxu0 %v1235
    %v1246 = vpop.f32.mrf.mxu0
    %v1247 = vadd.f32 0.0, %v1246
    %v1248 = vpop.f32.mrf.mxu0
    %1249 = vdwg.mxu0
    %v1250 = vadd.f32 %v1229, %v1247
    %v1251 = vxor.u32 %v1250, 2147483648
    %v1252 = vmul.f32 %v1251, 1.442695
    %v1253 = vpow.pop %v1252
    %v1254 = vadd.f32 %v1253, 1.0
    %v1255 = vrcp.pop %v1254
    %v1256 = vmul.f32 %v1254, %v1255
    %v1257 = vsub.f32 1.0, %v1256
    %v1258 = vmul.f32 %v1255, %v1257
    %v1259 = vadd.f32 %v1255, %v1258
    %vm1260 = vweird.f32 %v1254
    %vm1261 = vweird.f32 %v1255
    %vm1262 = vmor %vm1260, %vm1261
    %v1263 = vsel %vm1262, %v1255, %v1259
    %v1264 = vand.u32 2147483647, %v1254
    %vm1265 = vcmp.eq.f32.partialorder %v1264, 8.507059e+37
    %v1266 = vand.u32 %v1254, 2147483648
    %v1267 = vor.u32 1.1754944e-38, %v1266
    %v1268 = vsel %vm1265, %v1267, %v1263
    %v1269 = vmul.f32 1.0, %v1268
    %v1270 = vtanh.pop %v1250
    %v1271 = vmul.f32 %v1269, %v1216
    %1273 = vrot.lane.b32.xlu0 %v1270, 64
    %v1274 = vpop.permute.xlu0 %1273
    %v1276 = vmul.f32 %v1269, %v1274
    %1278 = vrot.lane.b32.xlu0 %v1276, 32
    %v1279 = vpop.permute.xlu0 %1278
    %v1281 = vadd.f32 %v1271, %v1279
    %v1282 = vtanh.pop %v1281
    %1284 = vrot.lane.b32.xlu0 %v1282, 64
    %v1285 = vpop.permute.xlu0 %1284
    %v1287 = vmul.f32 %v1269, %v1285
    %1289 = vrot.lane.b32.xlu0 %v1287, 32
    %v1290 = vpop.permute.xlu0 %1289
    %v1292 = vmax.f32 %v1227, %v1290
    %s1293 = scalar_lea.vmem [#allocation6], 48
    %v1294 = vld [vmem:[%s1293] sm:$0xff]
    %v1295 = vpack.c.bf16 %v1287, %v1287
    %1297 = vrot.lane.b32.xlu0 %v1295, 32
    %v1298 = vpop.permute.xlu0 %1297
    %v1300 = vsel %vm114, %v1298, 0
    %1302 = vmatpush.bf16.msra.mxu0 0
    %1303 = vmatpush.bf16.msra.mxu0 0
    %1304 = vmatpush.bf16.msra.mxu0 0
    %1305 = vmatpush.bf16.msra.mxu0 0
    %1306 = vmatpush.bf16.msra.mxu0 0
    %1307 = vmatpush.bf16.msra.mxu0 0
    %1308 = vmatpush.bf16.msra.mxu0 %v902
    %1309 = vmatpush.bf16.msra.mxu0 %v901
    %1310 = vmatmul.bf16.gmra.mxu0 %v1300
    %v1311 = vpop.f32.mrf.mxu0
    %v1312 = vadd.f32 0.0, %v1311
    %v1313 = vpop.f32.mrf.mxu0
    %1314 = vdwg.mxu0
    %v1315 = vadd.f32 %v1294, %v1312
    %v1316 = vxor.u32 %v1315, 2147483648
    %v1317 = vmul.f32 %v1316, 1.442695
    %v1318 = vpow.pop %v1317
    %v1319 = vadd.f32 %v1318, 1.0
    %v1320 = vrcp.pop %v1319
    %v1321 = vmul.f32 %v1319, %v1320
    %v1322 = vsub.f32 1.0, %v1321
    %v1323 = vmul.f32 %v1320, %v1322
    %v1324 = vadd.f32 %v1320, %v1323
    %vm1325 = vweird.f32 %v1319
    %vm1326 = vweird.f32 %v1320
    %vm1327 = vmor %vm1325, %vm1326
    %v1328 = vsel %vm1327, %v1320, %v1324
    %v1329 = vand.u32 2147483647, %v1319
    %vm1330 = vcmp.eq.f32.partialorder %v1329, 8.507059e+37
    %v1331 = vand.u32 %v1319, 2147483648
    %v1332 = vor.u32 1.1754944e-38, %v1331
    %v1333 = vsel %vm1330, %v1332, %v1328
    %v1334 = vmul.f32 1.0, %v1333
    %v1335 = vtanh.pop %v1315
    %v1336 = vmul.f32 %v1334, %v1281
    %1338 = vrot.lane.b32.xlu0 %v1335, 64
    %v1339 = vpop.permute.xlu0 %1338
    %v1341 = vmul.f32 %v1334, %v1339
    %1343 = vrot.lane.b32.xlu0 %v1341, 32
    %v1344 = vpop.permute.xlu0 %1343
    %v1346 = vadd.f32 %v1336, %v1344
    %v1347 = vtanh.pop %v1346
    %1349 = vrot.lane.b32.xlu0 %v1347, 64
    %v1350 = vpop.permute.xlu0 %1349
    %v1352 = vmul.f32 %v1334, %v1350
    %1354 = vrot.lane.b32.xlu0 %v1352, 32
    %v1355 = vpop.permute.xlu0 %1354
    %v1357 = vmax.f32 %v1292, %v1355
    %s1358 = scalar_lea.vmem [#allocation6], 56
    %v1359 = vld [vmem:[%s1358] sm:$0xff]
    %v1360 = vpack.c.bf16 %v1352, %v1352
    %1362 = vrot.lane.b32.xlu0 %v1360, 32
    %v1363 = vpop.permute.xlu0 %1362
    %v1365 = vsel %vm114, %v1363, 0
    %1367 = vmatpush.bf16.msra.mxu0 0
    %1368 = vmatpush.bf16.msra.mxu0 0
    %1369 = vmatpush.bf16.msra.mxu0 0
    %1370 = vmatpush.bf16.msra.mxu0 0
    %1371 = vmatpush.bf16.msra.mxu0 0
    %1372 = vmatpush.bf16.msra.mxu0 0
    %1373 = vmatpush.bf16.msra.mxu0 %v902
    %1374 = vmatpush.bf16.msra.mxu0 %v901
    %1375 = vmatmul.bf16.gmra.mxu0 %v1365
    %v1376 = vpop.f32.mrf.mxu0
    %v1377 = vadd.f32 0.0, %v1376
    %v1378 = vpop.f32.mrf.mxu0
    %1379 = vdwg.mxu0
    %v1380 = vadd.f32 %v1359, %v1377
    %v1381 = vxor.u32 %v1380, 2147483648
    %v1382 = vmul.f32 %v1381, 1.442695
    %v1383 = vpow.pop %v1382
    %v1384 = vadd.f32 %v1383, 1.0
    %v1385 = vrcp.pop %v1384
    %v1386 = vmul.f32 %v1384, %v1385
    %v1387 = vsub.f32 1.0, %v1386
    %v1388 = vmul.f32 %v1385, %v1387
    %v1389 = vadd.f32 %v1385, %v1388
    %vm1390 = vweird.f32 %v1384
    %vm1391 = vweird.f32 %v1385
    %vm1392 = vmor %vm1390, %vm1391
    %v1393 = vsel %vm1392, %v1385, %v1389
    %v1394 = vand.u32 2147483647, %v1384
    %vm1395 = vcmp.eq.f32.partialorder %v1394, 8.507059e+37
    %v1396 = vand.u32 %v1384, 2147483648
    %v1397 = vor.u32 1.1754944e-38, %v1396
    %v1398 = vsel %vm1395, %v1397, %v1393
    %v1399 = vmul.f32 1.0, %v1398
    %v1400 = vtanh.pop %v1380
    %v1401 = vmul.f32 %v1399, %v1346
    %1403 = vrot.lane.b32.xlu0 %v1400, 64
    %v1404 = vpop.permute.xlu0 %1403
    %v1406 = vmul.f32 %v1399, %v1404
    %1408 = vrot.lane.b32.xlu0 %v1406, 32
    %v1409 = vpop.permute.xlu0 %1408
    %v1411 = vadd.f32 %v1401, %v1409
    %v1412 = vtanh.pop %v1411
    %1414 = vrot.lane.b32.xlu0 %v1412, 64
    %v1415 = vpop.permute.xlu0 %1414
    %v1417 = vmul.f32 %v1399, %v1415
    %1419 = vrot.lane.b32.xlu0 %v1417, 32
    %v1420 = vpop.permute.xlu0 %1419
    %v1422 = vmax.f32 %v1357, %v1420
    %1423 = vst.msk [vmem:[#allocation4] sm:$0xff] %vm114, %v1422
    %1424 = vst.msk [vmem:[%s882] sm:$0xff] %vm114, %v1420
    %1426 = vrot.lane.b32.xlu0 %v1411, 96
    %v1427 = vpop.permute.xlu0 %1426
    %1429 = vst.msk [vmem:[%s884] sm:$0xff] %vm114, %v1427
    // Predicated region
    $region50: #{tpu_custom_call.1} parent=1 // pred_check
      %p1430 = pneg %p78
    $region51: #{tpu_custom_call.1} parent=1 // pred_check_branch
      %1432 = sbr.rel (%p1430) target = $region53
    $region52: #{tpu_custom_call.1} parent=1 // pred_region
      %v1433 = vld [vmem:[#allocation4] sm:$0xff]
      %v1434 = vld [vmem:[%s6] sm:$0xff]
      %v1435 = vld [vmem:[%s6 + $0x8] sm:$0xff]
      %v1436 = vld [vmem:[%s6 + $0x10] sm:$0xff]
      %v1437 = vld [vmem:[%s6 + $0x18] sm:$0xff]
      %v1438 = vld [vmem:[%s7] sm:$0x1]
      %v1440 = vperm.slane %v1438, 0
      %v1443 = vsel %vm114, %v1433, 0
      %1445 = vmatpush.msra.mxu0 0.0
      %1446 = vmatpush.msra.mxu0 0.0
      %1447 = vmatpush.msra.mxu0 0.0
      %1448 = vmatpush.msra.mxu0 0.0
      %1449 = vmatpush.msra.mxu0 0.0
      %1450 = vmatpush.msra.mxu0 0.0
      %1451 = vmatpush.msra.mxu0 0.0
      %1452 = vmatpush.msra.mxu0 0.0
      %1453 = vmatpush.msra.mxu0 0.0
      %1454 = vmatpush.msra.mxu0 0.0
      %1455 = vmatpush.msra.mxu0 0.0
      %1456 = vmatpush.msra.mxu0 0.0
      %1457 = vmatpush.msra.mxu0 %v1437
      %1458 = vmatpush.msra.mxu0 %v1436
      %1459 = vmatpush.msra.mxu0 %v1435
      %1460 = vmatpush.msra.mxu0 %v1434
      %1461 = vmatmul.f32.gmra.mxu0 %v1443
      %v1462 = vpop.f32.mrf.mxu0
      %v1463 = vadd.f32 %v1440, %v1462
      %1464 = vdwg.mxu0
      %vm1465 = vcmask 64512
      %1466 = vst.msk [vmem:[#allocation13] sm:$0xff] %vm1465, %v1463
    $region53: #{tpu_custom_call.1} parent=1 // pred_fallthru
      _
    // Predicated region
    $region54: #{tpu_custom_call.1} parent=1 // pred_check
      _
    $region55: #{tpu_custom_call.1} parent=1 // pred_check_branch
      %1468 = sbr.rel (0) target = $region57
    $region56: #{tpu_custom_call.1} parent=1 // pred_region
      %1470 = vsyncadd [#allocation9], 0
      %s1472 = sshll.u32 [#allocation13], 4
      %s1473 = int_to_ptr.vmem [resolvable:$true] %s1472
      %s1474 = sshll.u32 %s8, 4
      %s1475 = int_to_ptr.hbm [resolvable:$true] %s1474
      %1477 = dma.vmem_to_hbm [thread:$0]  %s1473, 128, %s1475, [#allocation9]
    $region57: #{tpu_custom_call.1} parent=1 // pred_fallthru
      _
    // Predicated region
    $region58: #{tpu_custom_call.1} parent=1 // pred_check
      _
    $region59: #{tpu_custom_call.1} parent=1 // pred_check_branch
      %1479 = sbr.rel (0) target = $region61
    $region60: #{tpu_custom_call.1} parent=1 // pred_region
      %1481 = dma.done [#allocation9], 128
    $region61: #{tpu_custom_call.1} parent=1 // pred_fallthru
      _
    %1482 = vsyncpa [#allocation8], 1
    %1483 = vsyncpa [#allocation11], 1
    %1484 = vsyncpa [#allocation9], 1

</llo_original>
